<compile_context>
chip_gen: v5e
topology: v5e:2x2
jax: 0.10.0
libtpu: 0.0.40
codegen_flags: <defaults>
</compile_context>

<pallas_src>
import functools

import jax
import jax.numpy as jnp
import numpy as np
from jax.experimental import pallas as pl
from jax.experimental.pallas import tpu as pltpu


def _build_tap_masks(H, W):
    """(9, 1, H*W) float masks: 1.0 where the shifted tap stays inside the image."""
    P = H * W
    ii, jj = np.meshgrid(np.arange(H), np.arange(W), indexing="ij")
    ii = ii.reshape(-1)
    jj = jj.reshape(-1)
    masks = np.zeros((9, 1, P), np.float32)
    for k in range(9):
        dy, dx = k // 3 - 1, k % 3 - 1
        valid = ((ii + dy >= 0) & (ii + dy < H) &
                 (jj + dx >= 0) & (jj + dx < W))
        masks[k, 0] = valid.astype(np.float32)
    return masks


def _conv3x3_relu(x, wt_ref, b_ref, m_ref, *, W):
    """3x3 same-padding conv + bias + ReLU in the (C, H*W) pixels-on-lanes layout.

    x:      (Cin, P)        activations, P = H*W flat row-major
    wt_ref: (Cout, 9*Cin)   weights, tap-major (tap k uses columns k*Cin:(k+1)*Cin)
    b_ref:  (Cout, 1)       bias (f32)
    m_ref:  (9, 1, P)       per-tap border masks
    """
    Cin, P = x.shape
    Cout = wt_ref.shape[0]
    x = x.astype(wt_ref.dtype)
    acc = jnp.zeros((Cout, P), jnp.float32)
    for k in range(9):
        dy, dx = k // 3 - 1, k % 3 - 1
        off = dy * W + dx                       # flat spatial shift of this tap
        t = x if off == 0 else pltpu.roll(x, (-off) % P, axis=1)
        if dy != 0 or dx != 0:
            t = t * m_ref[k]                    # zero wrapped / out-of-image pixels
        acc = acc + jnp.dot(wt_ref[:, k * Cin:(k + 1) * Cin], t,
                            preferred_element_type=jnp.float32)
    return jnp.maximum(acc + b_ref[...], 0.0)


def _conv1x1_relu(h, wt_ref, b_ref):
    y = jnp.dot(wt_ref[...], h.astype(wt_ref.dtype),
                preferred_element_type=jnp.float32) + b_ref[...]
    return jnp.maximum(y, 0.0)


def _scm_kernel(x_ref, m_ref,
                w1_ref, b1_ref, w2_ref, b2_ref, w3_ref, b3_ref,
                w4_ref, b4_ref, w5a_ref, w5b_ref, b5_ref,
                out_ref, *, W):
    # x_ref:   (1, Ci, P)   one input image, channels on sublanes, pixels on lanes
    # m_ref:   (9, 1, P)    3x3 tap border masks (shared by both 3x3 convs)
    # w1_ref:  (C4, 9*Ci)   conv1 3x3 weights, tap-major, transposed
    # w2_ref:  (C2, C4)     conv2 1x1 weights, transposed
    # w3_ref:  (C2, 9*C2)   conv3 3x3 weights, tap-major, transposed
    # w4_ref:  (Cm, C2)     conv4 1x1 weights, transposed   (Cm = out_plane - Ci)
    # w5a_ref: (Cout, Ci)   final 1x1 weight rows acting on x
    # w5b_ref: (Cout, Cm)   final 1x1 weight rows acting on main(x)
    # b*_ref:  (C*, 1)      biases (f32)
    # out_ref: (1, Cout, P) lane-dense output block (NCHW-flat)
    Ci = x_ref.shape[1]
    x = x_ref[0]                                                 # (Ci, P)

    # main(): conv3x3+ReLU -> conv1x1+ReLU -> conv3x3+ReLU -> conv1x1+ReLU
    h = _conv3x3_relu(x, w1_ref, b1_ref, m_ref, W=W)             # (C4, P) f32
    h = _conv1x1_relu(h, w2_ref, b2_ref)                         # (C2, P) f32
    h = _conv3x3_relu(h, w3_ref, b3_ref, m_ref, W=W)             # (C2, P) f32
    h = _conv1x1_relu(h, w4_ref, b4_ref)                         # (Cm, P) f32

    # conv(cat([x, main(x)])) folded: main(x) part on the MXU, x part (K=Ci,
    # tiny) as Ci broadcast FMAs on the VPU so it overlaps with the MXU pass.
    out = jnp.dot(w5b_ref[...], h.astype(w5b_ref.dtype),
                  preferred_element_type=jnp.float32)            # (Cout, P)
    for c in range(Ci):
        out = out + (w5a_ref[:, c:c + 1].astype(jnp.float32) *
                     x[c:c + 1, :].astype(jnp.float32))
    out = out + b5_ref[...]

    out_ref[0] = out.astype(out_ref.dtype)


def scm_pallas(x_nchw, params, *, compute_dtype=jnp.float32):
    """SCM forward. x_nchw: (B, Ci, H, W) float32.
    params: [(w1,b1),(w2,b2),(w3,b3),(w4,b4),(w5,b5)] with w in HWIO layout.
    compute_dtype: jnp.float32 (default) or jnp.bfloat16 for v6e/v7x speed."""
    (w1, b1), (w2, b2), (w3, b3), (w4, b4), (w5, b5) = params
    B, Ci, H, W = x_nchw.shape
    P = H * W
    C4 = w1.shape[-1]
    C2 = w2.shape[-1]
    Cm = w4.shape[-1]
    Cin5 = w5.shape[-2]                 # == Ci + Cm; do NOT assume == Cout
    Cout = w5.shape[-1]
    assert Cin5 == Ci + Cm
    cdt = compute_dtype

    # NCHW -> (B, Ci, H*W): pure reshape, pixels land on the lane axis.
    x = x_nchw.reshape(B, Ci, P).astype(cdt)

    # ---- weight packing, hoisted out of the kernel ----
    def t3x3(w):                        # (3,3,Cin,Cout) -> (Cout, 9*Cin) tap-major
        return jnp.transpose(w, (3, 0, 1, 2)).reshape(w.shape[-1], -1).astype(cdt)

    def t1x1(w):                        # (1,1,Cin,Cout) -> (Cout, Cin)
        return jnp.transpose(w.reshape(w.shape[-2], w.shape[-1])).astype(cdt)

    w1t, w3t = t3x3(w1), t3x3(w3)
    w2t, w4t = t1x1(w2), t1x1(w4)
    w5m = w5.reshape(Cin5, Cout)
    w5at = jnp.transpose(w5m[:Ci]).astype(cdt)     # (Cout, Ci): acts on x
    w5bt = jnp.transpose(w5m[Ci:]).astype(cdt)     # (Cout, Cm): acts on main(x)

    masks = jnp.asarray(_build_tap_masks(H, W), dtype=cdt)

    def _b(v):                          # bias -> (C, 1) f32 column
        return v.reshape(-1, 1).astype(jnp.float32)

    def _const(shape):
        n = len(shape)
        return pl.BlockSpec(shape, lambda b, _n=n: (0,) * _n)

    kernel = functools.partial(_scm_kernel, W=W)

    out_flat = pl.pallas_call(
        kernel,
        out_shape=jax.ShapeDtypeStruct((B, Cout, P), x_nchw.dtype),
        grid_spec=pltpu.PrefetchScalarGridSpec(
            num_scalar_prefetch=0,
            grid=(B,),
            in_specs=[
                pl.BlockSpec((1, Ci, P), lambda b: (b, 0, 0)),   # x (per image)
                _const((9, 1, P)),                               # tap masks
                _const((C4, 9 * Ci)), _const((C4, 1)),           # conv1
                _const((C2, C4)),     _const((C2, 1)),           # conv2
                _const((C2, 9 * C2)), _const((C2, 1)),           # conv3
                _const((Cm, C2)),     _const((Cm, 1)),           # conv4
                _const((Cout, Ci)), _const((Cout, Cm)), _const((Cout, 1)),  # conv5
            ],
            out_specs=pl.BlockSpec((1, Cout, P), lambda b: (b, 0, 0)),
        ),
        compiler_params=pltpu.CompilerParams(
            dimension_semantics=("parallel",)),                  # megacore / v7x
    )(x, masks, w1t, _b(b1), w2t, _b(b2), w3t, _b(b3), w4t, _b(b4),
      w5at, w5bt, _b(b5))

    return out_flat.reshape(B, Cout, H, W)                       # already NCHW


# ------------------------------ pure-JAX reference ----------------------------
def _conv_ref(x_nhwc, w_hwio, b, relu=True):
    k = w_hwio.shape[0]
    p = k // 2
    y = jax.lax.conv_general_dilated(
        x_nhwc, w_hwio, window_strides=(1, 1),
        padding=((p, p), (p, p)),
        dimension_numbers=("NHWC", "HWIO", "NHWC")) + b
    return jax.nn.relu(y) if relu else y


def scm_ref(x_nchw, params):
    (w1, b1), (w2, b2), (w3, b3), (w4, b4), (w5, b5) = params
    x = jnp.transpose(x_nchw, (0, 2, 3, 1))
    m = _conv_ref(x, w1, b1)
    m = _conv_ref(m, w2, b2)
    m = _conv_ref(m, w3, b3)
    m = _conv_ref(m, w4, b4)
    y = jnp.concatenate([x, m], axis=-1)
    y = _conv_ref(y, w5, b5, relu=False)
    return jnp.transpose(y, (0, 3, 1, 2))


# ------------------------------------ main ------------------------------------
if __name__ == "__main__":
    B, Cin, H, W = 2, 3, 16, 16
    OUT_PLANE = 32
    C4, C2 = OUT_PLANE // 4, OUT_PLANE // 2
    Cm = OUT_PLANE - Cin

    key = jax.random.PRNGKey(0)
    key, kx = jax.random.split(key)
    x = jax.random.normal(kx, (B, Cin, H, W), dtype=jnp.float32)

    def make_conv(k, ksize, cin, cout):
        k1, k2 = jax.random.split(k)
        fan_in = cin * ksize * ksize
        bound = 1.0 / np.sqrt(fan_in)
        w = jax.random.uniform(k1, (ksize, ksize, cin, cout),
                               jnp.float32, -bound, bound)
        b = jax.random.uniform(k2, (cout,), jnp.float32, -bound, bound)
        return w, b

    keys = jax.random.split(key, 5)
    params = [
        make_conv(keys[0], 3, Cin, C4),        # BasicConv(3,   op/4, k=3, relu)
        make_conv(keys[1], 1, C4, C2),         # BasicConv(op/4, op/2, k=1, relu)
        make_conv(keys[2], 3, C2, C2),         # BasicConv(op/2, op/2, k=3, relu)
        make_conv(keys[3], 1, C2, Cm),         # BasicConv(op/2, op-3, k=1, relu)
        make_conv(keys[4], 1, OUT_PLANE, OUT_PLANE),  # final 1x1, no relu
    ]

    # f32 compute so the check is tight; pass compute_dtype=jnp.bfloat16 on
    # v6e/v7x for 2x MXU rate / half the DMA with f32 accumulation.
    out = jax.block_until_ready(scm_pallas(x, params))
    ref = jax.block_until_ready(scm_ref(x, params))

    np.testing.assert_allclose(np.asarray(out), np.asarray(ref),
                               rtol=1e-4, atol=1e-4)
    print("KERNEL_OK")
</pallas_src>

<mosaic_0001>
module attributes {stable_mosaic.version = 11 : i64} {
  func.func @_scm_kernel(%arg0: i32, %arg1: memref<1x3x256xf32, #tpu.memory_space<vmem>>, %arg2: memref<9x1x256xf32, #tpu.memory_space<vmem>>, %arg3: memref<8x27xf32, #tpu.memory_space<vmem>>, %arg4: memref<8x1xf32, #tpu.memory_space<vmem>>, %arg5: memref<16x8xf32, #tpu.memory_space<vmem>>, %arg6: memref<16x1xf32, #tpu.memory_space<vmem>>, %arg7: memref<16x144xf32, #tpu.memory_space<vmem>>, %arg8: memref<16x1xf32, #tpu.memory_space<vmem>>, %arg9: memref<29x16xf32, #tpu.memory_space<vmem>>, %arg10: memref<29x1xf32, #tpu.memory_space<vmem>>, %arg11: memref<32x3xf32, #tpu.memory_space<vmem>>, %arg12: memref<32x29xf32, #tpu.memory_space<vmem>>, %arg13: memref<32x1xf32, #tpu.memory_space<vmem>>, %arg14: memref<1x32x256xf32, #tpu.memory_space<vmem>>) attributes {dimension_semantics = [#tpu.dimension_semantics<parallel>], iteration_bounds = array<i64: 2>, scalar_prefetch = 0 : i64, scratch_operands = 0 : i64, tpu.core_type = #tpu.core_type<tc>, window_params = [{transform_indices = @transform_0, window_bounds = array<i64: 1, 3, 256>}, {pipeline_mode = #tpu.pipeline_mode<synchronous>, transform_indices = @transform_1, window_bounds = array<i64: 9, 1, 256>}, {pipeline_mode = #tpu.pipeline_mode<synchronous>, transform_indices = @transform_2, window_bounds = array<i64: 8, 27>}, {pipeline_mode = #tpu.pipeline_mode<synchronous>, transform_indices = @transform_3, window_bounds = array<i64: 8, 1>}, {pipeline_mode = #tpu.pipeline_mode<synchronous>, transform_indices = @transform_4, window_bounds = array<i64: 16, 8>}, {pipeline_mode = #tpu.pipeline_mode<synchronous>, transform_indices = @transform_5, window_bounds = array<i64: 16, 1>}, {pipeline_mode = #tpu.pipeline_mode<synchronous>, transform_indices = @transform_6, window_bounds = array<i64: 16, 144>}, {pipeline_mode = #tpu.pipeline_mode<synchronous>, transform_indices = @transform_7, window_bounds = array<i64: 16, 1>}, {pipeline_mode = #tpu.pipeline_mode<synchronous>, transform_indices = @transform_8, window_bounds = array<i64: 29, 16>}, {pipeline_mode = #tpu.pipeline_mode<synchronous>, transform_indices = @transform_9, window_bounds = array<i64: 29, 1>}, {pipeline_mode = #tpu.pipeline_mode<synchronous>, transform_indices = @transform_10, window_bounds = array<i64: 32, 3>}, {pipeline_mode = #tpu.pipeline_mode<synchronous>, transform_indices = @transform_11, window_bounds = array<i64: 32, 29>}, {pipeline_mode = #tpu.pipeline_mode<synchronous>, transform_indices = @transform_12, window_bounds = array<i64: 32, 1>}, {transform_indices = @transform_13, window_bounds = array<i64: 1, 32, 256>}]} {
    %c0 = arith.constant 0 : index
    %c0_0 = arith.constant 0 : index
    %c0_1 = arith.constant 0 : index
    %0 = vector.load %arg1[%c0, %c0_0, %c0_1] : memref<1x3x256xf32, #tpu.memory_space<vmem>>, vector<1x3x256xf32>
    %1 = vector.shape_cast %0 : vector<1x3x256xf32> to vector<3x256xf32>
    %cst = arith.constant 0.000000e+00 : f32
    %2 = vector.broadcast %cst : f32 to vector<8x256xf32>
    %c17_i32 = arith.constant 17 : i32
    %3 = tpu.dynamic_rotate %1 by %c17_i32 dim 1 : vector<3x256xf32>, i32 -> vector<3x256xf32>
    %c0_2 = arith.constant 0 : index
    %c0_3 = arith.constant 0 : index
    %c0_4 = arith.constant 0 : index
    %4 = vector.load %arg2[%c0_2, %c0_3, %c0_4] : memref<9x1x256xf32, #tpu.memory_space<vmem>>, vector<1x1x256xf32>
    %5 = vector.shape_cast %4 : vector<1x1x256xf32> to vector<1x256xf32>
    %6 = vector.broadcast %5 : vector<1x256xf32> to vector<3x256xf32>
    %7 = arith.mulf %3, %6 : vector<3x256xf32>
    %c0_5 = arith.constant 0 : index
    %c0_6 = arith.constant 0 : index
    %8 = vector.load %arg3[%c0_5, %c0_6] : memref<8x27xf32, #tpu.memory_space<vmem>>, vector<8x3xf32>
    %cst_7 = arith.constant dense<0.000000e+00> : vector<8x256xf32>
    %9 = tpu.matmul %8, %7, %cst_7 {dimension_numbers = #tpu.dot_dimension_numbers<[1], [0], [0], [1], [0, 0, 1, 1], [], []>} : vector<8x3xf32>, vector<3x256xf32>, vector<8x256xf32> -> vector<8x256xf32>
    %10 = arith.addf %2, %9 : vector<8x256xf32>
    %c16_i32 = arith.constant 16 : i32
    %11 = tpu.dynamic_rotate %1 by %c16_i32 dim 1 : vector<3x256xf32>, i32 -> vector<3x256xf32>
    %c1 = arith.constant 1 : index
    %c0_8 = arith.constant 0 : index
    %c0_9 = arith.constant 0 : index
    %12 = vector.load %arg2[%c1, %c0_8, %c0_9] : memref<9x1x256xf32, #tpu.memory_space<vmem>>, vector<1x1x256xf32>
    %13 = vector.shape_cast %12 : vector<1x1x256xf32> to vector<1x256xf32>
    %14 = vector.broadcast %13 : vector<1x256xf32> to vector<3x256xf32>
    %15 = arith.mulf %11, %14 : vector<3x256xf32>
    %c0_10 = arith.constant 0 : index
    %c3 = arith.constant 3 : index
    %16 = vector.load %arg3[%c0_10, %c3] : memref<8x27xf32, #tpu.memory_space<vmem>>, vector<8x3xf32>
    %cst_11 = arith.constant dense<0.000000e+00> : vector<8x256xf32>
    %17 = tpu.matmul %16, %15, %cst_11 {dimension_numbers = #tpu.dot_dimension_numbers<[1], [0], [0], [1], [0, 0, 1, 1], [], []>} : vector<8x3xf32>, vector<3x256xf32>, vector<8x256xf32> -> vector<8x256xf32>
    %18 = arith.addf %10, %17 : vector<8x256xf32>
    %c15_i32 = arith.constant 15 : i32
    %19 = tpu.dynamic_rotate %1 by %c15_i32 dim 1 : vector<3x256xf32>, i32 -> vector<3x256xf32>
    %c2 = arith.constant 2 : index
    %c0_12 = arith.constant 0 : index
    %c0_13 = arith.constant 0 : index
    %20 = vector.load %arg2[%c2, %c0_12, %c0_13] : memref<9x1x256xf32, #tpu.memory_space<vmem>>, vector<1x1x256xf32>
    %21 = vector.shape_cast %20 : vector<1x1x256xf32> to vector<1x256xf32>
    %22 = vector.broadcast %21 : vector<1x256xf32> to vector<3x256xf32>
    %23 = arith.mulf %19, %22 : vector<3x256xf32>
    %c0_14 = arith.constant 0 : index
    %c6 = arith.constant 6 : index
    %24 = vector.load %arg3[%c0_14, %c6] : memref<8x27xf32, #tpu.memory_space<vmem>>, vector<8x3xf32>
    %cst_15 = arith.constant dense<0.000000e+00> : vector<8x256xf32>
    %25 = tpu.matmul %24, %23, %cst_15 {dimension_numbers = #tpu.dot_dimension_numbers<[1], [0], [0], [1], [0, 0, 1, 1], [], []>} : vector<8x3xf32>, vector<3x256xf32>, vector<8x256xf32> -> vector<8x256xf32>
    %26 = arith.addf %18, %25 : vector<8x256xf32>
    %c1_i32 = arith.constant 1 : i32
    %27 = tpu.dynamic_rotate %1 by %c1_i32 dim 1 : vector<3x256xf32>, i32 -> vector<3x256xf32>
    %c3_16 = arith.constant 3 : index
    %c0_17 = arith.constant 0 : index
    %c0_18 = arith.constant 0 : index
    %28 = vector.load %arg2[%c3_16, %c0_17, %c0_18] : memref<9x1x256xf32, #tpu.memory_space<vmem>>, vector<1x1x256xf32>
    %29 = vector.shape_cast %28 : vector<1x1x256xf32> to vector<1x256xf32>
    %30 = vector.broadcast %29 : vector<1x256xf32> to vector<3x256xf32>
    %31 = arith.mulf %27, %30 : vector<3x256xf32>
    %c0_19 = arith.constant 0 : index
    %c9 = arith.constant 9 : index
    %32 = vector.load %arg3[%c0_19, %c9] : memref<8x27xf32, #tpu.memory_space<vmem>>, vector<8x3xf32>
    %cst_20 = arith.constant dense<0.000000e+00> : vector<8x256xf32>
    %33 = tpu.matmul %32, %31, %cst_20 {dimension_numbers = #tpu.dot_dimension_numbers<[1], [0], [0], [1], [0, 0, 1, 1], [], []>} : vector<8x3xf32>, vector<3x256xf32>, vector<8x256xf32> -> vector<8x256xf32>
    %34 = arith.addf %26, %33 : vector<8x256xf32>
    %c0_21 = arith.constant 0 : index
    %c12 = arith.constant 12 : index
    %35 = vector.load %arg3[%c0_21, %c12] : memref<8x27xf32, #tpu.memory_space<vmem>>, vector<8x3xf32>
    %cst_22 = arith.constant dense<0.000000e+00> : vector<8x256xf32>
    %36 = tpu.matmul %35, %1, %cst_22 {dimension_numbers = #tpu.dot_dimension_numbers<[1], [0], [0], [1], [0, 0, 1, 1], [], []>} : vector<8x3xf32>, vector<3x256xf32>, vector<8x256xf32> -> vector<8x256xf32>
    %37 = arith.addf %34, %36 : vector<8x256xf32>
    %c255_i32 = arith.constant 255 : i32
    %38 = tpu.dynamic_rotate %1 by %c255_i32 dim 1 : vector<3x256xf32>, i32 -> vector<3x256xf32>
    %c5 = arith.constant 5 : index
    %c0_23 = arith.constant 0 : index
    %c0_24 = arith.constant 0 : index
    %39 = vector.load %arg2[%c5, %c0_23, %c0_24] : memref<9x1x256xf32, #tpu.memory_space<vmem>>, vector<1x1x256xf32>
    %40 = vector.shape_cast %39 : vector<1x1x256xf32> to vector<1x256xf32>
    %41 = vector.broadcast %40 : vector<1x256xf32> to vector<3x256xf32>
    %42 = arith.mulf %38, %41 : vector<3x256xf32>
    %c0_25 = arith.constant 0 : index
    %c15 = arith.constant 15 : index
    %43 = vector.load %arg3[%c0_25, %c15] : memref<8x27xf32, #tpu.memory_space<vmem>>, vector<8x3xf32>
    %cst_26 = arith.constant dense<0.000000e+00> : vector<8x256xf32>
    %44 = tpu.matmul %43, %42, %cst_26 {dimension_numbers = #tpu.dot_dimension_numbers<[1], [0], [0], [1], [0, 0, 1, 1], [], []>} : vector<8x3xf32>, vector<3x256xf32>, vector<8x256xf32> -> vector<8x256xf32>
    %45 = arith.addf %37, %44 : vector<8x256xf32>
    %c241_i32 = arith.constant 241 : i32
    %46 = tpu.dynamic_rotate %1 by %c241_i32 dim 1 : vector<3x256xf32>, i32 -> vector<3x256xf32>
    %c6_27 = arith.constant 6 : index
    %c0_28 = arith.constant 0 : index
    %c0_29 = arith.constant 0 : index
    %47 = vector.load %arg2[%c6_27, %c0_28, %c0_29] : memref<9x1x256xf32, #tpu.memory_space<vmem>>, vector<1x1x256xf32>
    %48 = vector.shape_cast %47 : vector<1x1x256xf32> to vector<1x256xf32>
    %49 = vector.broadcast %48 : vector<1x256xf32> to vector<3x256xf32>
    %50 = arith.mulf %46, %49 : vector<3x256xf32>
    %c0_30 = arith.constant 0 : index
    %c18 = arith.constant 18 : index
    %51 = vector.load %arg3[%c0_30, %c18] : memref<8x27xf32, #tpu.memory_space<vmem>>, vector<8x3xf32>
    %cst_31 = arith.constant dense<0.000000e+00> : vector<8x256xf32>
    %52 = tpu.matmul %51, %50, %cst_31 {dimension_numbers = #tpu.dot_dimension_numbers<[1], [0], [0], [1], [0, 0, 1, 1], [], []>} : vector<8x3xf32>, vector<3x256xf32>, vector<8x256xf32> -> vector<8x256xf32>
    %53 = arith.addf %45, %52 : vector<8x256xf32>
    %c240_i32 = arith.constant 240 : i32
    %54 = tpu.dynamic_rotate %1 by %c240_i32 dim 1 : vector<3x256xf32>, i32 -> vector<3x256xf32>
    %c7 = arith.constant 7 : index
    %c0_32 = arith.constant 0 : index
    %c0_33 = arith.constant 0 : index
    %55 = vector.load %arg2[%c7, %c0_32, %c0_33] : memref<9x1x256xf32, #tpu.memory_space<vmem>>, vector<1x1x256xf32>
    %56 = vector.shape_cast %55 : vector<1x1x256xf32> to vector<1x256xf32>
    %57 = vector.broadcast %56 : vector<1x256xf32> to vector<3x256xf32>
    %58 = arith.mulf %54, %57 : vector<3x256xf32>
    %c0_34 = arith.constant 0 : index
    %c21 = arith.constant 21 : index
    %59 = vector.load %arg3[%c0_34, %c21] : memref<8x27xf32, #tpu.memory_space<vmem>>, vector<8x3xf32>
    %cst_35 = arith.constant dense<0.000000e+00> : vector<8x256xf32>
    %60 = tpu.matmul %59, %58, %cst_35 {dimension_numbers = #tpu.dot_dimension_numbers<[1], [0], [0], [1], [0, 0, 1, 1], [], []>} : vector<8x3xf32>, vector<3x256xf32>, vector<8x256xf32> -> vector<8x256xf32>
    %61 = arith.addf %53, %60 : vector<8x256xf32>
    %c239_i32 = arith.constant 239 : i32
    %62 = tpu.dynamic_rotate %1 by %c239_i32 dim 1 : vector<3x256xf32>, i32 -> vector<3x256xf32>
    %c8 = arith.constant 8 : index
    %c0_36 = arith.constant 0 : index
    %c0_37 = arith.constant 0 : index
    %63 = vector.load %arg2[%c8, %c0_36, %c0_37] : memref<9x1x256xf32, #tpu.memory_space<vmem>>, vector<1x1x256xf32>
    %64 = vector.shape_cast %63 : vector<1x1x256xf32> to vector<1x256xf32>
    %65 = vector.broadcast %64 : vector<1x256xf32> to vector<3x256xf32>
    %66 = arith.mulf %62, %65 : vector<3x256xf32>
    %c0_38 = arith.constant 0 : index
    %c24 = arith.constant 24 : index
    %67 = vector.load %arg3[%c0_38, %c24] : memref<8x27xf32, #tpu.memory_space<vmem>>, vector<8x3xf32>
    %cst_39 = arith.constant dense<0.000000e+00> : vector<8x256xf32>
    %68 = tpu.matmul %67, %66, %cst_39 {dimension_numbers = #tpu.dot_dimension_numbers<[1], [0], [0], [1], [0, 0, 1, 1], [], []>} : vector<8x3xf32>, vector<3x256xf32>, vector<8x256xf32> -> vector<8x256xf32>
    %69 = arith.addf %61, %68 : vector<8x256xf32>
    %c0_40 = arith.constant 0 : index
    %c0_41 = arith.constant 0 : index
    %70 = vector.load %arg4[%c0_40, %c0_41] : memref<8x1xf32, #tpu.memory_space<vmem>>, vector<8x1xf32>
    %71 = vector.broadcast %70 : vector<8x1xf32> to vector<8x256xf32>
    %72 = arith.addf %69, %71 : vector<8x256xf32>
    %cst_42 = arith.constant 0.000000e+00 : f32
    %73 = vector.broadcast %cst_42 : f32 to vector<8x256xf32>
    %74 = arith.maximumf %72, %73 : vector<8x256xf32>
    %c0_43 = arith.constant 0 : index
    %c0_44 = arith.constant 0 : index
    %75 = vector.load %arg5[%c0_43, %c0_44] : memref<16x8xf32, #tpu.memory_space<vmem>>, vector<16x8xf32>
    %cst_45 = arith.constant dense<0.000000e+00> : vector<16x256xf32>
    %76 = tpu.matmul %75, %74, %cst_45 {dimension_numbers = #tpu.dot_dimension_numbers<[1], [0], [0], [1], [0, 0, 1, 1], [], []>} : vector<16x8xf32>, vector<8x256xf32>, vector<16x256xf32> -> vector<16x256xf32>
    %c0_46 = arith.constant 0 : index
    %c0_47 = arith.constant 0 : index
    %77 = vector.load %arg6[%c0_46, %c0_47] : memref<16x1xf32, #tpu.memory_space<vmem>>, vector<16x1xf32>
    %78 = vector.broadcast %77 : vector<16x1xf32> to vector<16x256xf32>
    %79 = arith.addf %76, %78 : vector<16x256xf32>
    %cst_48 = arith.constant 0.000000e+00 : f32
    %80 = vector.broadcast %cst_48 : f32 to vector<16x256xf32>
    %81 = arith.maximumf %79, %80 : vector<16x256xf32>
    %cst_49 = arith.constant 0.000000e+00 : f32
    %82 = vector.broadcast %cst_49 : f32 to vector<16x256xf32>
    %c17_i32_50 = arith.constant 17 : i32
    %83 = tpu.dynamic_rotate %81 by %c17_i32_50 dim 1 : vector<16x256xf32>, i32 -> vector<16x256xf32>
    %c0_51 = arith.constant 0 : index
    %c0_52 = arith.constant 0 : index
    %c0_53 = arith.constant 0 : index
    %84 = vector.load %arg2[%c0_51, %c0_52, %c0_53] : memref<9x1x256xf32, #tpu.memory_space<vmem>>, vector<1x1x256xf32>
    %85 = vector.shape_cast %84 : vector<1x1x256xf32> to vector<1x256xf32>
    %86 = vector.broadcast %85 : vector<1x256xf32> to vector<16x256xf32>
    %87 = arith.mulf %83, %86 : vector<16x256xf32>
    %c0_54 = arith.constant 0 : index
    %c0_55 = arith.constant 0 : index
    %88 = vector.load %arg7[%c0_54, %c0_55] : memref<16x144xf32, #tpu.memory_space<vmem>>, vector<16x16xf32>
    %cst_56 = arith.constant dense<0.000000e+00> : vector<16x256xf32>
    %89 = tpu.matmul %88, %87, %cst_56 {dimension_numbers = #tpu.dot_dimension_numbers<[1], [0], [0], [1], [0, 0, 1, 1], [], []>} : vector<16x16xf32>, vector<16x256xf32>, vector<16x256xf32> -> vector<16x256xf32>
    %90 = arith.addf %82, %89 : vector<16x256xf32>
    %c16_i32_57 = arith.constant 16 : i32
    %91 = tpu.dynamic_rotate %81 by %c16_i32_57 dim 1 : vector<16x256xf32>, i32 -> vector<16x256xf32>
    %c1_58 = arith.constant 1 : index
    %c0_59 = arith.constant 0 : index
    %c0_60 = arith.constant 0 : index
    %92 = vector.load %arg2[%c1_58, %c0_59, %c0_60] : memref<9x1x256xf32, #tpu.memory_space<vmem>>, vector<1x1x256xf32>
    %93 = vector.shape_cast %92 : vector<1x1x256xf32> to vector<1x256xf32>
    %94 = vector.broadcast %93 : vector<1x256xf32> to vector<16x256xf32>
    %95 = arith.mulf %91, %94 : vector<16x256xf32>
    %c0_61 = arith.constant 0 : index
    %c16 = arith.constant 16 : index
    %96 = vector.load %arg7[%c0_61, %c16] : memref<16x144xf32, #tpu.memory_space<vmem>>, vector<16x16xf32>
    %cst_62 = arith.constant dense<0.000000e+00> : vector<16x256xf32>
    %97 = tpu.matmul %96, %95, %cst_62 {dimension_numbers = #tpu.dot_dimension_numbers<[1], [0], [0], [1], [0, 0, 1, 1], [], []>} : vector<16x16xf32>, vector<16x256xf32>, vector<16x256xf32> -> vector<16x256xf32>
    %98 = arith.addf %90, %97 : vector<16x256xf32>
    %c15_i32_63 = arith.constant 15 : i32
    %99 = tpu.dynamic_rotate %81 by %c15_i32_63 dim 1 : vector<16x256xf32>, i32 -> vector<16x256xf32>
    %c2_64 = arith.constant 2 : index
    %c0_65 = arith.constant 0 : index
    %c0_66 = arith.constant 0 : index
    %100 = vector.load %arg2[%c2_64, %c0_65, %c0_66] : memref<9x1x256xf32, #tpu.memory_space<vmem>>, vector<1x1x256xf32>
    %101 = vector.shape_cast %100 : vector<1x1x256xf32> to vector<1x256xf32>
    %102 = vector.broadcast %101 : vector<1x256xf32> to vector<16x256xf32>
    %103 = arith.mulf %99, %102 : vector<16x256xf32>
    %c0_67 = arith.constant 0 : index
    %c32 = arith.constant 32 : index
    %104 = vector.load %arg7[%c0_67, %c32] : memref<16x144xf32, #tpu.memory_space<vmem>>, vector<16x16xf32>
    %cst_68 = arith.constant dense<0.000000e+00> : vector<16x256xf32>
    %105 = tpu.matmul %104, %103, %cst_68 {dimension_numbers = #tpu.dot_dimension_numbers<[1], [0], [0], [1], [0, 0, 1, 1], [], []>} : vector<16x16xf32>, vector<16x256xf32>, vector<16x256xf32> -> vector<16x256xf32>
    %106 = arith.addf %98, %105 : vector<16x256xf32>
    %c1_i32_69 = arith.constant 1 : i32
    %107 = tpu.dynamic_rotate %81 by %c1_i32_69 dim 1 : vector<16x256xf32>, i32 -> vector<16x256xf32>
    %c3_70 = arith.constant 3 : index
    %c0_71 = arith.constant 0 : index
    %c0_72 = arith.constant 0 : index
    %108 = vector.load %arg2[%c3_70, %c0_71, %c0_72] : memref<9x1x256xf32, #tpu.memory_space<vmem>>, vector<1x1x256xf32>
    %109 = vector.shape_cast %108 : vector<1x1x256xf32> to vector<1x256xf32>
    %110 = vector.broadcast %109 : vector<1x256xf32> to vector<16x256xf32>
    %111 = arith.mulf %107, %110 : vector<16x256xf32>
    %c0_73 = arith.constant 0 : index
    %c48 = arith.constant 48 : index
    %112 = vector.load %arg7[%c0_73, %c48] : memref<16x144xf32, #tpu.memory_space<vmem>>, vector<16x16xf32>
    %cst_74 = arith.constant dense<0.000000e+00> : vector<16x256xf32>
    %113 = tpu.matmul %112, %111, %cst_74 {dimension_numbers = #tpu.dot_dimension_numbers<[1], [0], [0], [1], [0, 0, 1, 1], [], []>} : vector<16x16xf32>, vector<16x256xf32>, vector<16x256xf32> -> vector<16x256xf32>
    %114 = arith.addf %106, %113 : vector<16x256xf32>
    %c0_75 = arith.constant 0 : index
    %c64 = arith.constant 64 : index
    %115 = vector.load %arg7[%c0_75, %c64] : memref<16x144xf32, #tpu.memory_space<vmem>>, vector<16x16xf32>
    %cst_76 = arith.constant dense<0.000000e+00> : vector<16x256xf32>
    %116 = tpu.matmul %115, %81, %cst_76 {dimension_numbers = #tpu.dot_dimension_numbers<[1], [0], [0], [1], [0, 0, 1, 1], [], []>} : vector<16x16xf32>, vector<16x256xf32>, vector<16x256xf32> -> vector<16x256xf32>
    %117 = arith.addf %114, %116 : vector<16x256xf32>
    %c255_i32_77 = arith.constant 255 : i32
    %118 = tpu.dynamic_rotate %81 by %c255_i32_77 dim 1 : vector<16x256xf32>, i32 -> vector<16x256xf32>
    %c5_78 = arith.constant 5 : index
    %c0_79 = arith.constant 0 : index
    %c0_80 = arith.constant 0 : index
    %119 = vector.load %arg2[%c5_78, %c0_79, %c0_80] : memref<9x1x256xf32, #tpu.memory_space<vmem>>, vector<1x1x256xf32>
    %120 = vector.shape_cast %119 : vector<1x1x256xf32> to vector<1x256xf32>
    %121 = vector.broadcast %120 : vector<1x256xf32> to vector<16x256xf32>
    %122 = arith.mulf %118, %121 : vector<16x256xf32>
    %c0_81 = arith.constant 0 : index
    %c80 = arith.constant 80 : index
    %123 = vector.load %arg7[%c0_81, %c80] : memref<16x144xf32, #tpu.memory_space<vmem>>, vector<16x16xf32>
    %cst_82 = arith.constant dense<0.000000e+00> : vector<16x256xf32>
    %124 = tpu.matmul %123, %122, %cst_82 {dimension_numbers = #tpu.dot_dimension_numbers<[1], [0], [0], [1], [0, 0, 1, 1], [], []>} : vector<16x16xf32>, vector<16x256xf32>, vector<16x256xf32> -> vector<16x256xf32>
    %125 = arith.addf %117, %124 : vector<16x256xf32>
    %c241_i32_83 = arith.constant 241 : i32
    %126 = tpu.dynamic_rotate %81 by %c241_i32_83 dim 1 : vector<16x256xf32>, i32 -> vector<16x256xf32>
    %c6_84 = arith.constant 6 : index
    %c0_85 = arith.constant 0 : index
    %c0_86 = arith.constant 0 : index
    %127 = vector.load %arg2[%c6_84, %c0_85, %c0_86] : memref<9x1x256xf32, #tpu.memory_space<vmem>>, vector<1x1x256xf32>
    %128 = vector.shape_cast %127 : vector<1x1x256xf32> to vector<1x256xf32>
    %129 = vector.broadcast %128 : vector<1x256xf32> to vector<16x256xf32>
    %130 = arith.mulf %126, %129 : vector<16x256xf32>
    %c0_87 = arith.constant 0 : index
    %c96 = arith.constant 96 : index
    %131 = vector.load %arg7[%c0_87, %c96] : memref<16x144xf32, #tpu.memory_space<vmem>>, vector<16x16xf32>
    %cst_88 = arith.constant dense<0.000000e+00> : vector<16x256xf32>
    %132 = tpu.matmul %131, %130, %cst_88 {dimension_numbers = #tpu.dot_dimension_numbers<[1], [0], [0], [1], [0, 0, 1, 1], [], []>} : vector<16x16xf32>, vector<16x256xf32>, vector<16x256xf32> -> vector<16x256xf32>
    %133 = arith.addf %125, %132 : vector<16x256xf32>
    %c240_i32_89 = arith.constant 240 : i32
    %134 = tpu.dynamic_rotate %81 by %c240_i32_89 dim 1 : vector<16x256xf32>, i32 -> vector<16x256xf32>
    %c7_90 = arith.constant 7 : index
    %c0_91 = arith.constant 0 : index
    %c0_92 = arith.constant 0 : index
    %135 = vector.load %arg2[%c7_90, %c0_91, %c0_92] : memref<9x1x256xf32, #tpu.memory_space<vmem>>, vector<1x1x256xf32>
    %136 = vector.shape_cast %135 : vector<1x1x256xf32> to vector<1x256xf32>
    %137 = vector.broadcast %136 : vector<1x256xf32> to vector<16x256xf32>
    %138 = arith.mulf %134, %137 : vector<16x256xf32>
    %c0_93 = arith.constant 0 : index
    %c112 = arith.constant 112 : index
    %139 = vector.load %arg7[%c0_93, %c112] : memref<16x144xf32, #tpu.memory_space<vmem>>, vector<16x16xf32>
    %cst_94 = arith.constant dense<0.000000e+00> : vector<16x256xf32>
    %140 = tpu.matmul %139, %138, %cst_94 {dimension_numbers = #tpu.dot_dimension_numbers<[1], [0], [0], [1], [0, 0, 1, 1], [], []>} : vector<16x16xf32>, vector<16x256xf32>, vector<16x256xf32> -> vector<16x256xf32>
    %141 = arith.addf %133, %140 : vector<16x256xf32>
    %c239_i32_95 = arith.constant 239 : i32
    %142 = tpu.dynamic_rotate %81 by %c239_i32_95 dim 1 : vector<16x256xf32>, i32 -> vector<16x256xf32>
    %c8_96 = arith.constant 8 : index
    %c0_97 = arith.constant 0 : index
    %c0_98 = arith.constant 0 : index
    %143 = vector.load %arg2[%c8_96, %c0_97, %c0_98] : memref<9x1x256xf32, #tpu.memory_space<vmem>>, vector<1x1x256xf32>
    %144 = vector.shape_cast %143 : vector<1x1x256xf32> to vector<1x256xf32>
    %145 = vector.broadcast %144 : vector<1x256xf32> to vector<16x256xf32>
    %146 = arith.mulf %142, %145 : vector<16x256xf32>
    %c0_99 = arith.constant 0 : index
    %c128 = arith.constant 128 : index
    %147 = vector.load %arg7[%c0_99, %c128] : memref<16x144xf32, #tpu.memory_space<vmem>>, vector<16x16xf32>
    %cst_100 = arith.constant dense<0.000000e+00> : vector<16x256xf32>
    %148 = tpu.matmul %147, %146, %cst_100 {dimension_numbers = #tpu.dot_dimension_numbers<[1], [0], [0], [1], [0, 0, 1, 1], [], []>} : vector<16x16xf32>, vector<16x256xf32>, vector<16x256xf32> -> vector<16x256xf32>
    %149 = arith.addf %141, %148 : vector<16x256xf32>
    %c0_101 = arith.constant 0 : index
    %c0_102 = arith.constant 0 : index
    %150 = vector.load %arg8[%c0_101, %c0_102] : memref<16x1xf32, #tpu.memory_space<vmem>>, vector<16x1xf32>
    %151 = vector.broadcast %150 : vector<16x1xf32> to vector<16x256xf32>
    %152 = arith.addf %149, %151 : vector<16x256xf32>
    %cst_103 = arith.constant 0.000000e+00 : f32
    %153 = vector.broadcast %cst_103 : f32 to vector<16x256xf32>
    %154 = arith.maximumf %152, %153 : vector<16x256xf32>
    %c0_104 = arith.constant 0 : index
    %c0_105 = arith.constant 0 : index
    %155 = vector.load %arg9[%c0_104, %c0_105] : memref<29x16xf32, #tpu.memory_space<vmem>>, vector<29x16xf32>
    %cst_106 = arith.constant dense<0.000000e+00> : vector<29x256xf32>
    %156 = tpu.matmul %155, %154, %cst_106 {dimension_numbers = #tpu.dot_dimension_numbers<[1], [0], [0], [1], [0, 0, 1, 1], [], []>} : vector<29x16xf32>, vector<16x256xf32>, vector<29x256xf32> -> vector<29x256xf32>
    %c0_107 = arith.constant 0 : index
    %c0_108 = arith.constant 0 : index
    %157 = vector.load %arg10[%c0_107, %c0_108] : memref<29x1xf32, #tpu.memory_space<vmem>>, vector<29x1xf32>
    %158 = vector.broadcast %157 : vector<29x1xf32> to vector<29x256xf32>
    %159 = arith.addf %156, %158 : vector<29x256xf32>
    %cst_109 = arith.constant 0.000000e+00 : f32
    %160 = vector.broadcast %cst_109 : f32 to vector<29x256xf32>
    %161 = arith.maximumf %159, %160 : vector<29x256xf32>
    %c0_110 = arith.constant 0 : index
    %c0_111 = arith.constant 0 : index
    %162 = vector.load %arg12[%c0_110, %c0_111] : memref<32x29xf32, #tpu.memory_space<vmem>>, vector<32x29xf32>
    %cst_112 = arith.constant dense<0.000000e+00> : vector<32x256xf32>
    %163 = tpu.matmul %162, %161, %cst_112 {dimension_numbers = #tpu.dot_dimension_numbers<[1], [0], [0], [1], [0, 0, 1, 1], [], []>} : vector<32x29xf32>, vector<29x256xf32>, vector<32x256xf32> -> vector<32x256xf32>
    %c0_113 = arith.constant 0 : index
    %c0_114 = arith.constant 0 : index
    %164 = vector.load %arg11[%c0_113, %c0_114] : memref<32x3xf32, #tpu.memory_space<vmem>>, vector<32x1xf32>
    %165 = vector.extract_strided_slice %1 {offsets = [0, 0], sizes = [1, 256], strides = [1, 1]} : vector<3x256xf32> to vector<1x256xf32>
    %166 = vector.broadcast %164 : vector<32x1xf32> to vector<32x256xf32>
    %167 = vector.broadcast %165 : vector<1x256xf32> to vector<32x256xf32>
    %168 = arith.mulf %166, %167 : vector<32x256xf32>
    %169 = arith.addf %163, %168 : vector<32x256xf32>
    %c0_115 = arith.constant 0 : index
    %c1_116 = arith.constant 1 : index
    %170 = vector.load %arg11[%c0_115, %c1_116] : memref<32x3xf32, #tpu.memory_space<vmem>>, vector<32x1xf32>
    %171 = vector.extract_strided_slice %1 {offsets = [1, 0], sizes = [1, 256], strides = [1, 1]} : vector<3x256xf32> to vector<1x256xf32>
    %172 = vector.broadcast %170 : vector<32x1xf32> to vector<32x256xf32>
    %173 = vector.broadcast %171 : vector<1x256xf32> to vector<32x256xf32>
    %174 = arith.mulf %172, %173 : vector<32x256xf32>
    %175 = arith.addf %169, %174 : vector<32x256xf32>
    %c0_117 = arith.constant 0 : index
    %c2_118 = arith.constant 2 : index
    %176 = vector.load %arg11[%c0_117, %c2_118] : memref<32x3xf32, #tpu.memory_space<vmem>>, vector<32x1xf32>
    %177 = vector.extract_strided_slice %1 {offsets = [2, 0], sizes = [1, 256], strides = [1, 1]} : vector<3x256xf32> to vector<1x256xf32>
    %178 = vector.broadcast %176 : vector<32x1xf32> to vector<32x256xf32>
    %179 = vector.broadcast %177 : vector<1x256xf32> to vector<32x256xf32>
    %180 = arith.mulf %178, %179 : vector<32x256xf32>
    %181 = arith.addf %175, %180 : vector<32x256xf32>
    %c0_119 = arith.constant 0 : index
    %c0_120 = arith.constant 0 : index
    %182 = vector.load %arg13[%c0_119, %c0_120] : memref<32x1xf32, #tpu.memory_space<vmem>>, vector<32x1xf32>
    %183 = vector.broadcast %182 : vector<32x1xf32> to vector<32x256xf32>
    %184 = arith.addf %181, %183 : vector<32x256xf32>
    %c0_121 = arith.constant 0 : index
    %c0_122 = arith.constant 0 : index
    %c0_123 = arith.constant 0 : index
    %185 = vector.load %arg14[%c0_121, %c0_122, %c0_123] : memref<1x32x256xf32, #tpu.memory_space<vmem>>, vector<1x32x256xf32>
    %186 = vector.shape_cast %185 : vector<1x32x256xf32> to vector<32x256xf32>
    %187 = vector.shape_cast %184 : vector<32x256xf32> to vector<1x32x256xf32>
    tpu.vector_store %arg14[%c0_121, %c0_122, %c0_123], %187 {strides = array<i32>} : memref<1x32x256xf32, #tpu.memory_space<vmem>>, vector<1x32x256xf32>,
    return
  }
  func.func @transform_0(%arg0: i32) -> (i32, i32, i32) {
    %c0_i32 = arith.constant 0 : i32
    %c0_i32_0 = arith.constant 0 : i32
    %c0_i32_1 = arith.constant 0 : i32
    return %arg0, %c0_i32, %c0_i32_0 : i32, i32, i32
  }
  func.func @transform_1(%arg0: i32) -> (i32, i32, i32) {
    %c0_i32 = arith.constant 0 : i32
    %c0_i32_0 = arith.constant 0 : i32
    %c0_i32_1 = arith.constant 0 : i32
    %c0_i32_2 = arith.constant 0 : i32
    return %c0_i32, %c0_i32_0, %c0_i32_1 : i32, i32, i32
  }
  func.func @transform_2(%arg0: i32) -> (i32, i32) {
    %c0_i32 = arith.constant 0 : i32
    %c0_i32_0 = arith.constant 0 : i32
    %c0_i32_1 = arith.constant 0 : i32
    return %c0_i32, %c0_i32_0 : i32, i32
  }
  func.func @transform_3(%arg0: i32) -> (i32, i32) {
    %c0_i32 = arith.constant 0 : i32
    %c0_i32_0 = arith.constant 0 : i32
    %c0_i32_1 = arith.constant 0 : i32
    return %c0_i32, %c0_i32_0 : i32, i32
  }
  func.func @transform_4(%arg0: i32) -> (i32, i32) {
    %c0_i32 = arith.constant 0 : i32
    %c0_i32_0 = arith.constant 0 : i32
    %c0_i32_1 = arith.constant 0 : i32
    return %c0_i32, %c0_i32_0 : i32, i32
  }
  func.func @transform_5(%arg0: i32) -> (i32, i32) {
    %c0_i32 = arith.constant 0 : i32
    %c0_i32_0 = arith.constant 0 : i32
    %c0_i32_1 = arith.constant 0 : i32
    return %c0_i32, %c0_i32_0 : i32, i32
  }
  func.func @transform_6(%arg0: i32) -> (i32, i32) {
    %c0_i32 = arith.constant 0 : i32
    %c0_i32_0 = arith.constant 0 : i32
    %c0_i32_1 = arith.constant 0 : i32
    return %c0_i32, %c0_i32_0 : i32, i32
  }
  func.func @transform_7(%arg0: i32) -> (i32, i32) {
    %c0_i32 = arith.constant 0 : i32
    %c0_i32_0 = arith.constant 0 : i32
    %c0_i32_1 = arith.constant 0 : i32
    return %c0_i32, %c0_i32_0 : i32, i32
  }
  func.func @transform_8(%arg0: i32) -> (i32, i32) {
    %c0_i32 = arith.constant 0 : i32
    %c0_i32_0 = arith.constant 0 : i32
    %c0_i32_1 = arith.constant 0 : i32
    return %c0_i32, %c0_i32_0 : i32, i32
  }
  func.func @transform_9(%arg0: i32) -> (i32, i32) {
    %c0_i32 = arith.constant 0 : i32
    %c0_i32_0 = arith.constant 0 : i32
    %c0_i32_1 = arith.constant 0 : i32
    return %c0_i32, %c0_i32_0 : i32, i32
  }
  func.func @transform_10(%arg0: i32) -> (i32, i32) {
    %c0_i32 = arith.constant 0 : i32
    %c0_i32_0 = arith.constant 0 : i32
    %c0_i32_1 = arith.constant 0 : i32
    return %c0_i32, %c0_i32_0 : i32, i32
  }
  func.func @transform_11(%arg0: i32) -> (i32, i32) {
    %c0_i32 = arith.constant 0 : i32
    %c0_i32_0 = arith.constant 0 : i32
    %c0_i32_1 = arith.constant 0 : i32
    return %c0_i32, %c0_i32_0 : i32, i32
  }
  func.func @transform_12(%arg0: i32) -> (i32, i32) {
    %c0_i32 = arith.constant 0 : i32
    %c0_i32_0 = arith.constant 0 : i32
    %c0_i32_1 = arith.constant 0 : i32
    return %c0_i32, %c0_i32_0 : i32, i32
  }
  func.func @transform_13(%arg0: i32) -> (i32, i32, i32) {
    %c0_i32 = arith.constant 0 : i32
    %c0_i32_0 = arith.constant 0 : i32
    %c0_i32_1 = arith.constant 0 : i32
    return %arg0, %c0_i32, %c0_i32_0 : i32, i32, i32
  }
}

</mosaic_0001>

<llo_original>
// kernel: tpu_custom_call.1
$region0: #{tpu_custom_call.1}
  #allocation0 [shape = 'u32[]', space=smem, size = 0x4, offset = 0x4, fixed_abs, tag = 'smem constant byte address 0x4 - core index']
  #allocation1 [shape = 'u32[72,128]{1,0:T(1,128)}', space=vmem, size = 0x9000, scoped, tag = 'internal scratch']
  %s0 = inlined_call_operand.vmem [shape: f32[2,3,256], index: 0, kind: input, shape index: {}]
  %s1 = inlined_call_operand.vmem [shape: f32[9,1,256], index: 1, kind: input, shape index: {}]
  %s2 = inlined_call_operand.vmem [shape: f32[8,27], index: 2, kind: input, shape index: {}]
  %s3 = inlined_call_operand.vmem [shape: f32[8,1], index: 3, kind: input, shape index: {}]
  %s4 = inlined_call_operand.vmem [shape: f32[16,8], index: 4, kind: input, shape index: {}]
  %s5 = inlined_call_operand.vmem [shape: f32[16,1], index: 5, kind: input, shape index: {}]
  %s6 = inlined_call_operand.vmem [shape: f32[16,144], index: 6, kind: input, shape index: {}]
  %s7 = inlined_call_operand.vmem [shape: f32[16,1], index: 7, kind: input, shape index: {}]
  %s8 = inlined_call_operand.vmem [shape: f32[29,16], index: 8, kind: input, shape index: {}]
  %s9 = inlined_call_operand.vmem [shape: f32[29,1], index: 9, kind: input, shape index: {}]
  %s10 = inlined_call_operand.vmem [shape: f32[32,3], index: 10, kind: input, shape index: {}]
  %s11 = inlined_call_operand.vmem [shape: f32[32,29], index: 11, kind: input, shape index: {}]
  %s12 = inlined_call_operand.vmem [shape: f32[32,1], index: 12, kind: input, shape index: {}]
  %s13 = inlined_call_operand.hbm [shape: f32[2,32,256], index: 13, kind: output, shape index: {}]
  %s14 = sld [smem:[#allocation0]]
  $region85: #{tpu_custom_call.1} parent=0
    _
  %s16 = ssub.s32 1, %s14
  %s17 = scalar_select 0, %s16, %s14
  $region1: #{tpu_custom_call.1} parent=0
    #allocation2 [shape = 'u8[65536]{0}', space=vmem, size = 0x10000, scoped, tag = 'output window, operand 0']
    #allocation3 [shape = 's32[2]{0}', space=sflag, size = 0x8, scoped, tag = 'scoped memory for tpu_custom_call.1']
    %18 = vsyncpa [#allocation3], 0
    %s19 = scalar_lea.sflag [#allocation3], 1
    %20 = vsyncpa %s19, 0
    loop: start=0, step=1, limit=4
    $region2: #{tpu_custom_call.1} parent=1 // loop_pre_header
      _
    $region3: #{tpu_custom_call.1} parent=1 // loop_header
      %s22 = sphi 0, %s26
      %p23 = scmp.ge.s32.totalorder %s22, 4
      %s32 = sphi 0, %s34
      %s35 = sphi 0, %s32
      %s36 = sphi 0, %s35
      %s52 = sphi 0, %s36
      %s56 = sphi 0, %s56
      %s58 = sphi 0, %s56
      %s59 = sphi 0, %s58
      %s73 = sphi 0, %s59
      %s77 = sphi 0, %s77
      %s79 = sphi 0, %s77
      %s80 = sphi 0, %s79
      %s94 = sphi 0, %s80
      %s98 = sphi 0, %s98
      %s100 = sphi 0, %s98
      %s101 = sphi 0, %s100
      %s115 = sphi 0, %s101
      %s119 = sphi 0, %s119
      %s121 = sphi 0, %s119
      %s122 = sphi 0, %s121
      %s136 = sphi 0, %s122
      %s140 = sphi 0, %s140
      %s142 = sphi 0, %s140
      %s143 = sphi 0, %s142
      %s157 = sphi 0, %s143
      %s161 = sphi 0, %s161
      %s163 = sphi 0, %s161
      %s164 = sphi 0, %s163
      %s178 = sphi 0, %s164
      %s182 = sphi 0, %s182
      %s184 = sphi 0, %s182
      %s185 = sphi 0, %s184
      %s199 = sphi 0, %s185
      %s203 = sphi 0, %s203
      %s205 = sphi 0, %s203
      %s206 = sphi 0, %s205
      %s220 = sphi 0, %s206
      %s224 = sphi 0, %s224
      %s226 = sphi 0, %s224
      %s227 = sphi 0, %s226
      %s241 = sphi 0, %s227
      %s245 = sphi 0, %s245
      %s247 = sphi 0, %s245
      %s248 = sphi 0, %s247
      %s262 = sphi 0, %s248
      %s266 = sphi 0, %s266
      %s268 = sphi 0, %s266
      %s269 = sphi 0, %s268
      %s283 = sphi 0, %s269
      %s287 = sphi 0, %s287
      %s289 = sphi 0, %s287
      %s290 = sphi 0, %s289
      %s304 = sphi 0, %s290
      %s310 = sphi 0, %s312
      %s313 = sphi 0, %s310
      %s314 = sphi 0, %s313
      %s330 = sphi 0, %s314
    $region4: #{tpu_custom_call.1} parent=1 // loop_header_branch
      %25 = sbr.rel (%p23) target = $region8
    $region5: #{tpu_custom_call.1} parent=1 // loop_body
      %s27 = ssub.s32 %s22, 1
      %s28 = ssub.s32 %s22, 2
      %s29 = sadd.s32 %s22, 1
      %s30 = ssub.s32 %s22, %s29
      %p31 = scmp.eq.s32.totalorder %s30, 0
      %s33 = sadd.s32 %s32, 1
      %s34 = scalar_select %p31, %s32, %s33
      %p37 = pneg %p31
      %p38 = scmp.eq.s32.totalorder %s22, 1
      %p39 = por %p37, %p38
      %p40 = scmp.ne.s32.totalorder %s32, %s35
      %p41 = scmp.eq.s32.totalorder %s22, 0
      %p42 = por %p40, %p41
      %p43 = scmp.ne.s32.totalorder %s32, %s35
      %p44 = scmp.eq.s32.totalorder %s27, 1
      %p45 = por %p43, %p44
      %p46 = scmp.ne.s32.totalorder %s35, %s36
      %p47 = scmp.eq.s32.totalorder %s27, 0
      %p48 = por %p46, %p47
      %p49 = scmp.ne.s32.totalorder %s35, %s36
      %p50 = scmp.eq.s32.totalorder %s28, 1
      %p51 = por %p49, %p50
      %p53 = scmp.ne.s32.totalorder %s36, %s52
      %p54 = scmp.eq.s32.totalorder %s28, 0
      %p55 = por %p53, %p54
      %s57 = sadd.s32 %s56, 1
      %p60 = scmp.eq.s32.totalorder %s22, 1
      %p61 = scmp.ne.s32.totalorder %s56, %s58
      %p62 = scmp.eq.s32.totalorder %s22, 0
      %p63 = por %p61, %p62
      %p64 = scmp.ne.s32.totalorder %s56, %s58
      %p65 = scmp.eq.s32.totalorder %s27, 1
      %p66 = por %p64, %p65
      %p67 = scmp.ne.s32.totalorder %s58, %s59
      %p68 = scmp.eq.s32.totalorder %s27, 0
      %p69 = por %p67, %p68
      %p70 = scmp.ne.s32.totalorder %s58, %s59
      %p71 = scmp.eq.s32.totalorder %s28, 1
      %p72 = por %p70, %p71
      %p74 = scmp.ne.s32.totalorder %s59, %s73
      %p75 = scmp.eq.s32.totalorder %s28, 0
      %p76 = por %p74, %p75
      %s78 = sadd.s32 %s77, 1
      %p81 = scmp.eq.s32.totalorder %s22, 1
      %p82 = scmp.ne.s32.totalorder %s77, %s79
      %p83 = scmp.eq.s32.totalorder %s22, 0
      %p84 = por %p82, %p83
      %p85 = scmp.ne.s32.totalorder %s77, %s79
      %p86 = scmp.eq.s32.totalorder %s27, 1
      %p87 = por %p85, %p86
      %p88 = scmp.ne.s32.totalorder %s79, %s80
      %p89 = scmp.eq.s32.totalorder %s27, 0
      %p90 = por %p88, %p89
      %p91 = scmp.ne.s32.totalorder %s79, %s80
      %p92 = scmp.eq.s32.totalorder %s28, 1
      %p93 = por %p91, %p92
      %p95 = scmp.ne.s32.totalorder %s80, %s94
      %p96 = scmp.eq.s32.totalorder %s28, 0
      %p97 = por %p95, %p96
      %s99 = sadd.s32 %s98, 1
      %p102 = scmp.eq.s32.totalorder %s22, 1
      %p103 = scmp.ne.s32.totalorder %s98, %s100
      %p104 = scmp.eq.s32.totalorder %s22, 0
      %p105 = por %p103, %p104
      %p106 = scmp.ne.s32.totalorder %s98, %s100
      %p107 = scmp.eq.s32.totalorder %s27, 1
      %p108 = por %p106, %p107
      %p109 = scmp.ne.s32.totalorder %s100, %s101
      %p110 = scmp.eq.s32.totalorder %s27, 0
      %p111 = por %p109, %p110
      %p112 = scmp.ne.s32.totalorder %s100, %s101
      %p113 = scmp.eq.s32.totalorder %s28, 1
      %p114 = por %p112, %p113
      %p116 = scmp.ne.s32.totalorder %s101, %s115
      %p117 = scmp.eq.s32.totalorder %s28, 0
      %p118 = por %p116, %p117
      %s120 = sadd.s32 %s119, 1
      %p123 = scmp.eq.s32.totalorder %s22, 1
      %p124 = scmp.ne.s32.totalorder %s119, %s121
      %p125 = scmp.eq.s32.totalorder %s22, 0
      %p126 = por %p124, %p125
      %p127 = scmp.ne.s32.totalorder %s119, %s121
      %p128 = scmp.eq.s32.totalorder %s27, 1
      %p129 = por %p127, %p128
      %p130 = scmp.ne.s32.totalorder %s121, %s122
      %p131 = scmp.eq.s32.totalorder %s27, 0
      %p132 = por %p130, %p131
      %p133 = scmp.ne.s32.totalorder %s121, %s122
      %p134 = scmp.eq.s32.totalorder %s28, 1
      %p135 = por %p133, %p134
      %p137 = scmp.ne.s32.totalorder %s122, %s136
      %p138 = scmp.eq.s32.totalorder %s28, 0
      %p139 = por %p137, %p138
      %s141 = sadd.s32 %s140, 1
      %p144 = scmp.eq.s32.totalorder %s22, 1
      %p145 = scmp.ne.s32.totalorder %s140, %s142
      %p146 = scmp.eq.s32.totalorder %s22, 0
      %p147 = por %p145, %p146
      %p148 = scmp.ne.s32.totalorder %s140, %s142
      %p149 = scmp.eq.s32.totalorder %s27, 1
      %p150 = por %p148, %p149
      %p151 = scmp.ne.s32.totalorder %s142, %s143
      %p152 = scmp.eq.s32.totalorder %s27, 0
      %p153 = por %p151, %p152
      %p154 = scmp.ne.s32.totalorder %s142, %s143
      %p155 = scmp.eq.s32.totalorder %s28, 1
      %p156 = por %p154, %p155
      %p158 = scmp.ne.s32.totalorder %s143, %s157
      %p159 = scmp.eq.s32.totalorder %s28, 0
      %p160 = por %p158, %p159
      %s162 = sadd.s32 %s161, 1
      %p165 = scmp.eq.s32.totalorder %s22, 1
      %p166 = scmp.ne.s32.totalorder %s161, %s163
      %p167 = scmp.eq.s32.totalorder %s22, 0
      %p168 = por %p166, %p167
      %p169 = scmp.ne.s32.totalorder %s161, %s163
      %p170 = scmp.eq.s32.totalorder %s27, 1
      %p171 = por %p169, %p170
      %p172 = scmp.ne.s32.totalorder %s163, %s164
      %p173 = scmp.eq.s32.totalorder %s27, 0
      %p174 = por %p172, %p173
      %p175 = scmp.ne.s32.totalorder %s163, %s164
      %p176 = scmp.eq.s32.totalorder %s28, 1
      %p177 = por %p175, %p176
      %p179 = scmp.ne.s32.totalorder %s164, %s178
      %p180 = scmp.eq.s32.totalorder %s28, 0
      %p181 = por %p179, %p180
      %s183 = sadd.s32 %s182, 1
      %p186 = scmp.eq.s32.totalorder %s22, 1
      %p187 = scmp.ne.s32.totalorder %s182, %s184
      %p188 = scmp.eq.s32.totalorder %s22, 0
      %p189 = por %p187, %p188
      %p190 = scmp.ne.s32.totalorder %s182, %s184
      %p191 = scmp.eq.s32.totalorder %s27, 1
      %p192 = por %p190, %p191
      %p193 = scmp.ne.s32.totalorder %s184, %s185
      %p194 = scmp.eq.s32.totalorder %s27, 0
      %p195 = por %p193, %p194
      %p196 = scmp.ne.s32.totalorder %s184, %s185
      %p197 = scmp.eq.s32.totalorder %s28, 1
      %p198 = por %p196, %p197
      %p200 = scmp.ne.s32.totalorder %s185, %s199
      %p201 = scmp.eq.s32.totalorder %s28, 0
      %p202 = por %p200, %p201
      %s204 = sadd.s32 %s203, 1
      %p207 = scmp.eq.s32.totalorder %s22, 1
      %p208 = scmp.ne.s32.totalorder %s203, %s205
      %p209 = scmp.eq.s32.totalorder %s22, 0
      %p210 = por %p208, %p209
      %p211 = scmp.ne.s32.totalorder %s203, %s205
      %p212 = scmp.eq.s32.totalorder %s27, 1
      %p213 = por %p211, %p212
      %p214 = scmp.ne.s32.totalorder %s205, %s206
      %p215 = scmp.eq.s32.totalorder %s27, 0
      %p216 = por %p214, %p215
      %p217 = scmp.ne.s32.totalorder %s205, %s206
      %p218 = scmp.eq.s32.totalorder %s28, 1
      %p219 = por %p217, %p218
      %p221 = scmp.ne.s32.totalorder %s206, %s220
      %p222 = scmp.eq.s32.totalorder %s28, 0
      %p223 = por %p221, %p222
      %s225 = sadd.s32 %s224, 1
      %p228 = scmp.eq.s32.totalorder %s22, 1
      %p229 = scmp.ne.s32.totalorder %s224, %s226
      %p230 = scmp.eq.s32.totalorder %s22, 0
      %p231 = por %p229, %p230
      %p232 = scmp.ne.s32.totalorder %s224, %s226
      %p233 = scmp.eq.s32.totalorder %s27, 1
      %p234 = por %p232, %p233
      %p235 = scmp.ne.s32.totalorder %s226, %s227
      %p236 = scmp.eq.s32.totalorder %s27, 0
      %p237 = por %p235, %p236
      %p238 = scmp.ne.s32.totalorder %s226, %s227
      %p239 = scmp.eq.s32.totalorder %s28, 1
      %p240 = por %p238, %p239
      %p242 = scmp.ne.s32.totalorder %s227, %s241
      %p243 = scmp.eq.s32.totalorder %s28, 0
      %p244 = por %p242, %p243
      %s246 = sadd.s32 %s245, 1
      %p249 = scmp.eq.s32.totalorder %s22, 1
      %p250 = scmp.ne.s32.totalorder %s245, %s247
      %p251 = scmp.eq.s32.totalorder %s22, 0
      %p252 = por %p250, %p251
      %p253 = scmp.ne.s32.totalorder %s245, %s247
      %p254 = scmp.eq.s32.totalorder %s27, 1
      %p255 = por %p253, %p254
      %p256 = scmp.ne.s32.totalorder %s247, %s248
      %p257 = scmp.eq.s32.totalorder %s27, 0
      %p258 = por %p256, %p257
      %p259 = scmp.ne.s32.totalorder %s247, %s248
      %p260 = scmp.eq.s32.totalorder %s28, 1
      %p261 = por %p259, %p260
      %p263 = scmp.ne.s32.totalorder %s248, %s262
      %p264 = scmp.eq.s32.totalorder %s28, 0
      %p265 = por %p263, %p264
      %s267 = sadd.s32 %s266, 1
      %p270 = scmp.eq.s32.totalorder %s22, 1
      %p271 = scmp.ne.s32.totalorder %s266, %s268
      %p272 = scmp.eq.s32.totalorder %s22, 0
      %p273 = por %p271, %p272
      %p274 = scmp.ne.s32.totalorder %s266, %s268
      %p275 = scmp.eq.s32.totalorder %s27, 1
      %p276 = por %p274, %p275
      %p277 = scmp.ne.s32.totalorder %s268, %s269
      %p278 = scmp.eq.s32.totalorder %s27, 0
      %p279 = por %p277, %p278
      %p280 = scmp.ne.s32.totalorder %s268, %s269
      %p281 = scmp.eq.s32.totalorder %s28, 1
      %p282 = por %p280, %p281
      %p284 = scmp.ne.s32.totalorder %s269, %s283
      %p285 = scmp.eq.s32.totalorder %s28, 0
      %p286 = por %p284, %p285
      %s288 = sadd.s32 %s287, 1
      %p291 = scmp.eq.s32.totalorder %s22, 1
      %p292 = scmp.ne.s32.totalorder %s287, %s289
      %p293 = scmp.eq.s32.totalorder %s22, 0
      %p294 = por %p292, %p293
      %p295 = scmp.ne.s32.totalorder %s287, %s289
      %p296 = scmp.eq.s32.totalorder %s27, 1
      %p297 = por %p295, %p296
      %p298 = scmp.ne.s32.totalorder %s289, %s290
      %p299 = scmp.eq.s32.totalorder %s27, 0
      %p300 = por %p298, %p299
      %p301 = scmp.ne.s32.totalorder %s289, %s290
      %p302 = scmp.eq.s32.totalorder %s28, 1
      %p303 = por %p301, %p302
      %p305 = scmp.ne.s32.totalorder %s290, %s304
      %p306 = scmp.eq.s32.totalorder %s28, 0
      %p307 = por %p305, %p306
      %s308 = ssub.s32 %s22, %s29
      %p309 = scmp.eq.s32.totalorder %s308, 0
      %s311 = sadd.s32 %s310, 1
      %s312 = scalar_select %p309, %s310, %s311
      %p315 = pneg %p309
      %p316 = scmp.eq.s32.totalorder %s22, 1
      %p317 = por %p315, %p316
      %p318 = scmp.ne.s32.totalorder %s310, %s313
      %p319 = scmp.eq.s32.totalorder %s22, 0
      %p320 = por %p318, %p319
      %p321 = scmp.ne.s32.totalorder %s310, %s313
      %p322 = scmp.eq.s32.totalorder %s27, 1
      %p323 = por %p321, %p322
      %p324 = scmp.ne.s32.totalorder %s313, %s314
      %p325 = scmp.eq.s32.totalorder %s27, 0
      %p326 = por %p324, %p325
      %p327 = scmp.ne.s32.totalorder %s313, %s314
      %p328 = scmp.eq.s32.totalorder %s28, 1
      %p329 = por %p327, %p328
      %p331 = scmp.ne.s32.totalorder %s314, %s330
      %p332 = scmp.eq.s32.totalorder %s28, 0
      %p333 = por %p331, %p332
      %p334 = scmp.le.s32.totalorder 1, %s22
      %p335 = scmp.lt.s32.totalorder %s22, 3
      %p336 = pnand %p334, %p335
      %p337 = pneg %p336
      // Predicated region
      $region9: #{tpu_custom_call.1} parent=5 // pred_check
        _
      $region10: #{tpu_custom_call.1} parent=5 // pred_check_branch
        %339 = sbr.rel (%p336) target = $region12
      $region11: #{tpu_custom_call.1} parent=5 // pred_region
        %s340 = ssub.s32 %s22, 1
        // Predicated region
        $region13: #{tpu_custom_call.1} parent=11 // pred_check
          %p341 = pneg %p69
        $region14: #{tpu_custom_call.1} parent=11 // pred_check_branch
          %343 = sbr.rel (%p341) target = $region16
        $region15: #{tpu_custom_call.1} parent=11 // pred_region
          _
        $region16: #{tpu_custom_call.1} parent=11 // pred_fallthru
          _
        // Predicated region
        $region17: #{tpu_custom_call.1} parent=11 // pred_check
          %p344 = pneg %p90
        $region18: #{tpu_custom_call.1} parent=11 // pred_check_branch
          %346 = sbr.rel (%p344) target = $region20
        $region19: #{tpu_custom_call.1} parent=11 // pred_region
          _
        $region20: #{tpu_custom_call.1} parent=11 // pred_fallthru
          _
        // Predicated region
        $region21: #{tpu_custom_call.1} parent=11 // pred_check
          %p347 = pneg %p111
        $region22: #{tpu_custom_call.1} parent=11 // pred_check_branch
          %349 = sbr.rel (%p347) target = $region24
        $region23: #{tpu_custom_call.1} parent=11 // pred_region
          _
        $region24: #{tpu_custom_call.1} parent=11 // pred_fallthru
          _
        // Predicated region
        $region25: #{tpu_custom_call.1} parent=11 // pred_check
          %p350 = pneg %p132
        $region26: #{tpu_custom_call.1} parent=11 // pred_check_branch
          %352 = sbr.rel (%p350) target = $region28
        $region27: #{tpu_custom_call.1} parent=11 // pred_region
          _
        $region28: #{tpu_custom_call.1} parent=11 // pred_fallthru
          _
        // Predicated region
        $region29: #{tpu_custom_call.1} parent=11 // pred_check
          %p353 = pneg %p153
        $region30: #{tpu_custom_call.1} parent=11 // pred_check_branch
          %355 = sbr.rel (%p353) target = $region32
        $region31: #{tpu_custom_call.1} parent=11 // pred_region
          _
        $region32: #{tpu_custom_call.1} parent=11 // pred_fallthru
          _
        // Predicated region
        $region33: #{tpu_custom_call.1} parent=11 // pred_check
          %p356 = pneg %p174
        $region34: #{tpu_custom_call.1} parent=11 // pred_check_branch
          %358 = sbr.rel (%p356) target = $region36
        $region35: #{tpu_custom_call.1} parent=11 // pred_region
          _
        $region36: #{tpu_custom_call.1} parent=11 // pred_fallthru
          _
        // Predicated region
        $region37: #{tpu_custom_call.1} parent=11 // pred_check
          %p359 = pneg %p195
        $region38: #{tpu_custom_call.1} parent=11 // pred_check_branch
          %361 = sbr.rel (%p359) target = $region40
        $region39: #{tpu_custom_call.1} parent=11 // pred_region
          _
        $region40: #{tpu_custom_call.1} parent=11 // pred_fallthru
          _
        // Predicated region
        $region41: #{tpu_custom_call.1} parent=11 // pred_check
          %p362 = pneg %p216
        $region42: #{tpu_custom_call.1} parent=11 // pred_check_branch
          %364 = sbr.rel (%p362) target = $region44
        $region43: #{tpu_custom_call.1} parent=11 // pred_region
          _
        $region44: #{tpu_custom_call.1} parent=11 // pred_fallthru
          _
        // Predicated region
        $region45: #{tpu_custom_call.1} parent=11 // pred_check
          %p365 = pneg %p237
        $region46: #{tpu_custom_call.1} parent=11 // pred_check_branch
          %367 = sbr.rel (%p365) target = $region48
        $region47: #{tpu_custom_call.1} parent=11 // pred_region
          _
        $region48: #{tpu_custom_call.1} parent=11 // pred_fallthru
          _
        // Predicated region
        $region49: #{tpu_custom_call.1} parent=11 // pred_check
          %p368 = pneg %p258
        $region50: #{tpu_custom_call.1} parent=11 // pred_check_branch
          %370 = sbr.rel (%p368) target = $region52
        $region51: #{tpu_custom_call.1} parent=11 // pred_region
          _
        $region52: #{tpu_custom_call.1} parent=11 // pred_fallthru
          _
        // Predicated region
        $region53: #{tpu_custom_call.1} parent=11 // pred_check
          %p371 = pneg %p279
        $region54: #{tpu_custom_call.1} parent=11 // pred_check_branch
          %373 = sbr.rel (%p371) target = $region56
        $region55: #{tpu_custom_call.1} parent=11 // pred_region
          _
        $region56: #{tpu_custom_call.1} parent=11 // pred_fallthru
          _
        // Predicated region
        $region57: #{tpu_custom_call.1} parent=11 // pred_check
          %p374 = pneg %p300
        $region58: #{tpu_custom_call.1} parent=11 // pred_check_branch
          %376 = sbr.rel (%p374) target = $region60
        $region59: #{tpu_custom_call.1} parent=11 // pred_region
          _
        $region60: #{tpu_custom_call.1} parent=11 // pred_fallthru
          _
      $region12: #{tpu_custom_call.1} parent=5 // pred_fallthru
        _
      %p377 = scmp.lt.s32.totalorder %s22, 2
      // Predicated region
      $region61: #{tpu_custom_call.1} parent=5 // pred_check
        %p378 = pneg %p377
      $region62: #{tpu_custom_call.1} parent=5 // pred_check_branch
        %380 = sbr.rel (%p378) target = $region64
      $region63: #{tpu_custom_call.1} parent=5 // pred_region
        // Predicated region
        $region65: #{tpu_custom_call.1} parent=63 // pred_check
          %p381 = pneg %p42
        $region66: #{tpu_custom_call.1} parent=63 // pred_check_branch
          %383 = sbr.rel (%p381) target = $region68
        $region67: #{tpu_custom_call.1} parent=63 // pred_region
          %p384 = scmp.lt.s32.totalorder %s22, 1
          %s385 = scalar_select %p384, %s22, 1
          %s386 = smul.addr %s385, 2
          %s387 = smul.addr %s386, 4
          %s388 = scalar_lea.vmem %s0, %s387
        $region68: #{tpu_custom_call.1} parent=63 // pred_fallthru
          _
      $region64: #{tpu_custom_call.1} parent=5 // pred_fallthru
        _
      %p389 = scmp.le.s32.totalorder 1, %s22
      %p390 = scmp.lt.s32.totalorder %s22, 3
      %p391 = pnand %p389, %p390
      %p392 = pneg %p391
      // Predicated region
      $region69: #{tpu_custom_call.1} parent=5 // pred_check
        _
      $region70: #{tpu_custom_call.1} parent=5 // pred_check_branch
        %394 = sbr.rel (%p391) target = $region72
      $region71: #{tpu_custom_call.1} parent=5 // pred_region
        %s395 = ssub.s32 %s22, 1
        %p396 = scmp.lt.s32.totalorder %s27, 1
        %s397 = scalar_select %p396, %s27, 1
        %s398 = smul.addr %s397, 2
        %s399 = smul.addr %s398, 4
        %s400 = scalar_lea.vmem %s0, %s399
        %p401 = pneg %p48
        %p402 = pneg %p45
        %p403 = pneg %p69
        %p404 = pneg %p66
        %p405 = pneg %p90
        %p406 = pneg %p87
        %p407 = pneg %p111
        %p408 = pneg %p108
        %p409 = pneg %p132
        %p410 = pneg %p129
        %p411 = pneg %p153
        %p412 = pneg %p150
        %p413 = pneg %p174
        %p414 = pneg %p171
        %p415 = pneg %p195
        %p416 = pneg %p192
        %p417 = pneg %p216
        %p418 = pneg %p213
        %p419 = pneg %p237
        %p420 = pneg %p234
        %p421 = pneg %p258
        %p422 = pneg %p255
        %p423 = pneg %p279
        %p424 = pneg %p276
        %p425 = pneg %p300
        %p426 = pneg %p297
        %p427 = pneg %p326
        %p428 = pneg %p323
        %s429 = sand.u32 %s313, 1
        %s430 = scalar_lea.sflag [#allocation3], %s429
        %s431 = sand.u32 %s313, 1
        %s432 = smul.addr %s431, 64
        %s433 = scalar_lea.vmem [#allocation2], %s432
        %p434 = scmp.lt.s32.totalorder %s27, 1
        %s435 = scalar_select %p434, %s27, 1
        %s436 = smul.addr %s435, 2
        %s437 = smul.addr %s436, 4
        %s438 = scalar_lea.vmem %s0, %s437
        %v439 = vld [vmem:[%s438] sm:$0x77]
        %441 = vst [vmem:[#allocation1] ss:$2 sm:$0xff] %v439
        %v442 = vld.sshfl [vmem:[#allocation1] sm:$0xff pattern:$0x75316420]
        %v443 = vld.sshfl [vmem:[#allocation1 + $0x8] sm:$0xff pattern:$0x75316420]
        %446 = vrot.lane.b32.xlu0 %v442, 17
        %v447 = vpop.permute.xlu0 %446
        %448 = vrot.lane.b32.xlu0 %v443, 17
        %v449 = vpop.permute.xlu0 %448
        %v450 = vlaneseq
        %v451 = vand.u32 %v450, 127
        %vm452 = vcmp.lt.s32.totalorder %v451, 17
        %v453 = vsel %vm452, %v447, %v449
        %v454 = vsel %vm452, %v449, %v447
        %v455 = vld [vmem:[%s1] sm:$0x3]
        %v457 = vperm.slane %v455, 0
        %v458 = vperm.slane %v455, 1
        %v461 = vmul.f32 %v454, %v457
        %v462 = vmul.f32 %v453, %v458
        %v463 = vld [vmem:[%s2] sm:$0xff]
        %464 = vst [vmem:[#allocation1] ss:$2 sm:$0xff] %v439
        %v465 = vld.sshfl [vmem:[#allocation1] sm:$0xff pattern:$0x75316420]
        %v466 = vld.sshfl [vmem:[#allocation1 + $0x8] sm:$0xff pattern:$0x75316420]
        %469 = vrot.lane.b32.xlu0 %v465, 16
        %v470 = vpop.permute.xlu0 %469
        %471 = vrot.lane.b32.xlu0 %v466, 16
        %v472 = vpop.permute.xlu0 %471
        %vm473 = vcmp.lt.s32.totalorder %v451, 16
        %v474 = vsel %vm473, %v470, %v472
        %v475 = vsel %vm473, %v472, %v470
        %s476 = scalar_lea.vmem %s1, 2
        %v477 = vld [vmem:[%s476] sm:$0x3]
        %v479 = vperm.slane %v477, 0
        %v480 = vperm.slane %v477, 1
        %v483 = vmul.f32 %v475, %v479
        %v484 = vmul.f32 %v474, %v480
        %v485 = vld [vmem:[%s2] sm:$0xff]
        %487 = vrot.lane.b32.xlu0 %v485, 125
        %v488 = vpop.permute.xlu0 %487
        %vm489 = vcmask 23552
        %v490 = vsel %vm489, %v488, 0
        %vm492 = vcmask 1042432
        %v494 = vsel %vm492, %v483, 0
        %v497 = vsel %vm492, %v484, 0
        %499 = vmatpush.msra.mxu0 0.0
        %500 = vmatpush.msra.mxu0 0.0
        %501 = vmatpush.msra.mxu0 0.0
        %502 = vmatpush.msra.mxu0 0.0
        %503 = vmatpush.msra.mxu0 0.0
        %504 = vmatpush.msra.mxu0 0.0
        %505 = vmatpush.msra.mxu0 0.0
        %506 = vmatpush.msra.mxu0 0.0
        %507 = vmatpush.msra.mxu0 0.0
        %508 = vmatpush.msra.mxu0 0.0
        %509 = vmatpush.msra.mxu0 0.0
        %510 = vmatpush.msra.mxu0 0.0
        %511 = vmatpush.msra.mxu0 0.0
        %512 = vmatpush.msra.mxu0 0.0
        %513 = vmatpush.msra.mxu0 0.0
        %514 = vmatpush.msra.mxu0 %v494
        %515 = vmatmul.f32.gmra.mxu0 %v490
        %v516 = vpop.f32.mrf.mxu0
        %v517 = vadd.f32 0.0, %v516
        %518 = vdwg.mxu0
        %519 = vmatpush.msra.mxu0 0.0
        %520 = vmatpush.msra.mxu0 0.0
        %521 = vmatpush.msra.mxu0 0.0
        %522 = vmatpush.msra.mxu0 0.0
        %523 = vmatpush.msra.mxu0 0.0
        %524 = vmatpush.msra.mxu0 0.0
        %525 = vmatpush.msra.mxu0 0.0
        %526 = vmatpush.msra.mxu0 0.0
        %527 = vmatpush.msra.mxu0 0.0
        %528 = vmatpush.msra.mxu0 0.0
        %529 = vmatpush.msra.mxu0 0.0
        %530 = vmatpush.msra.mxu0 0.0
        %531 = vmatpush.msra.mxu0 0.0
        %532 = vmatpush.msra.mxu0 0.0
        %533 = vmatpush.msra.mxu0 0.0
        %534 = vmatpush.msra.mxu0 %v497
        %535 = vmatmul.f32.gmra.mxu0 %v490
        %v536 = vpop.f32.mrf.mxu0
        %v537 = vadd.f32 0.0, %v536
        %538 = vdwg.mxu0
        %v540 = vsel %vm489, %v463, 0
        %v543 = vsel %vm492, %v461, 0
        %v546 = vsel %vm492, %v462, 0
        %548 = vmatpush.msra.mxu0 0.0
        %549 = vmatpush.msra.mxu0 0.0
        %550 = vmatpush.msra.mxu0 0.0
        %551 = vmatpush.msra.mxu0 0.0
        %552 = vmatpush.msra.mxu0 0.0
        %553 = vmatpush.msra.mxu0 0.0
        %554 = vmatpush.msra.mxu0 0.0
        %555 = vmatpush.msra.mxu0 0.0
        %556 = vmatpush.msra.mxu0 0.0
        %557 = vmatpush.msra.mxu0 0.0
        %558 = vmatpush.msra.mxu0 0.0
        %559 = vmatpush.msra.mxu0 0.0
        %560 = vmatpush.msra.mxu0 0.0
        %561 = vmatpush.msra.mxu0 0.0
        %562 = vmatpush.msra.mxu0 0.0
        %563 = vmatpush.msra.mxu0 %v543
        %564 = vmatmul.f32.gmra.mxu0 %v540
        %v565 = vpop.f32.mrf.mxu0
        %v566 = vadd.f32 %v517, %v565
        %567 = vdwg.mxu0
        %568 = vmatpush.msra.mxu0 0.0
        %569 = vmatpush.msra.mxu0 0.0
        %570 = vmatpush.msra.mxu0 0.0
        %571 = vmatpush.msra.mxu0 0.0
        %572 = vmatpush.msra.mxu0 0.0
        %573 = vmatpush.msra.mxu0 0.0
        %574 = vmatpush.msra.mxu0 0.0
        %575 = vmatpush.msra.mxu0 0.0
        %576 = vmatpush.msra.mxu0 0.0
        %577 = vmatpush.msra.mxu0 0.0
        %578 = vmatpush.msra.mxu0 0.0
        %579 = vmatpush.msra.mxu0 0.0
        %580 = vmatpush.msra.mxu0 0.0
        %581 = vmatpush.msra.mxu0 0.0
        %582 = vmatpush.msra.mxu0 0.0
        %583 = vmatpush.msra.mxu0 %v546
        %584 = vmatmul.f32.gmra.mxu0 %v540
        %v585 = vpop.f32.mrf.mxu0
        %v586 = vadd.f32 %v537, %v585
        %587 = vdwg.mxu0
        %588 = vst [vmem:[#allocation1] ss:$2 sm:$0xff] %v439
        %v589 = vld.sshfl [vmem:[#allocation1] sm:$0xff pattern:$0x75316420]
        %v590 = vld.sshfl [vmem:[#allocation1 + $0x8] sm:$0xff pattern:$0x75316420]
        %593 = vrot.lane.b32.xlu0 %v589, 15
        %v594 = vpop.permute.xlu0 %593
        %595 = vrot.lane.b32.xlu0 %v590, 15
        %v596 = vpop.permute.xlu0 %595
        %vm597 = vcmp.lt.s32.totalorder %v451, 15
        %v598 = vsel %vm597, %v594, %v596
        %v599 = vsel %vm597, %v596, %v594
        %s600 = scalar_lea.vmem %s1, 4
        %v601 = vld [vmem:[%s600] sm:$0x3]
        %v603 = vperm.slane %v601, 0
        %v604 = vperm.slane %v601, 1
        %v607 = vmul.f32 %v599, %v603
        %v608 = vmul.f32 %v598, %v604
        %v609 = vld [vmem:[%s2] sm:$0xff]
        %611 = vrot.lane.b32.xlu0 %v609, 122
        %v612 = vpop.permute.xlu0 %611
        %v613 = vsel %vm489, %v612, 0
        %v616 = vsel %vm492, %v607, 0
        %v619 = vsel %vm492, %v608, 0
        %621 = vmatpush.msra.mxu0 0.0
        %622 = vmatpush.msra.mxu0 0.0
        %623 = vmatpush.msra.mxu0 0.0
        %624 = vmatpush.msra.mxu0 0.0
        %625 = vmatpush.msra.mxu0 0.0
        %626 = vmatpush.msra.mxu0 0.0
        %627 = vmatpush.msra.mxu0 0.0
        %628 = vmatpush.msra.mxu0 0.0
        %629 = vmatpush.msra.mxu0 0.0
        %630 = vmatpush.msra.mxu0 0.0
        %631 = vmatpush.msra.mxu0 0.0
        %632 = vmatpush.msra.mxu0 0.0
        %633 = vmatpush.msra.mxu0 0.0
        %634 = vmatpush.msra.mxu0 0.0
        %635 = vmatpush.msra.mxu0 0.0
        %636 = vmatpush.msra.mxu0 %v616
        %637 = vmatmul.f32.gmra.mxu0 %v613
        %v638 = vpop.f32.mrf.mxu0
        %v639 = vadd.f32 0.0, %v638
        %640 = vdwg.mxu0
        %641 = vmatpush.msra.mxu0 0.0
        %642 = vmatpush.msra.mxu0 0.0
        %643 = vmatpush.msra.mxu0 0.0
        %644 = vmatpush.msra.mxu0 0.0
        %645 = vmatpush.msra.mxu0 0.0
        %646 = vmatpush.msra.mxu0 0.0
        %647 = vmatpush.msra.mxu0 0.0
        %648 = vmatpush.msra.mxu0 0.0
        %649 = vmatpush.msra.mxu0 0.0
        %650 = vmatpush.msra.mxu0 0.0
        %651 = vmatpush.msra.mxu0 0.0
        %652 = vmatpush.msra.mxu0 0.0
        %653 = vmatpush.msra.mxu0 0.0
        %654 = vmatpush.msra.mxu0 0.0
        %655 = vmatpush.msra.mxu0 0.0
        %656 = vmatpush.msra.mxu0 %v619
        %657 = vmatmul.f32.gmra.mxu0 %v613
        %v658 = vpop.f32.mrf.mxu0
        %v659 = vadd.f32 0.0, %v658
        %660 = vdwg.mxu0
        %v661 = vadd.f32 %v566, %v639
        %v662 = vadd.f32 %v586, %v659
        %663 = vst [vmem:[#allocation1] ss:$2 sm:$0xff] %v439
        %v664 = vld.sshfl [vmem:[#allocation1] sm:$0xff pattern:$0x75316420]
        %v665 = vld.sshfl [vmem:[#allocation1 + $0x8] sm:$0xff pattern:$0x75316420]
        %668 = vrot.lane.b32.xlu0 %v664, 1
        %v669 = vpop.permute.xlu0 %668
        %670 = vrot.lane.b32.xlu0 %v665, 1
        %v671 = vpop.permute.xlu0 %670
        %vm672 = vcmp.lt.s32.totalorder %v451, 1
        %v673 = vsel %vm672, %v669, %v671
        %v674 = vsel %vm672, %v671, %v669
        %s675 = scalar_lea.vmem %s1, 6
        %v676 = vld [vmem:[%s675] sm:$0x3]
        %v678 = vperm.slane %v676, 0
        %v679 = vperm.slane %v676, 1
        %v682 = vmul.f32 %v674, %v678
        %v683 = vmul.f32 %v673, %v679
        %v684 = vld [vmem:[%s2] sm:$0xff]
        %686 = vrot.lane.b32.xlu0 %v684, 119
        %v687 = vpop.permute.xlu0 %686
        %v688 = vsel %vm489, %v687, 0
        %v691 = vsel %vm492, %v682, 0
        %v694 = vsel %vm492, %v683, 0
        %696 = vmatpush.msra.mxu0 0.0
        %697 = vmatpush.msra.mxu0 0.0
        %698 = vmatpush.msra.mxu0 0.0
        %699 = vmatpush.msra.mxu0 0.0
        %700 = vmatpush.msra.mxu0 0.0
        %701 = vmatpush.msra.mxu0 0.0
        %702 = vmatpush.msra.mxu0 0.0
        %703 = vmatpush.msra.mxu0 0.0
        %704 = vmatpush.msra.mxu0 0.0
        %705 = vmatpush.msra.mxu0 0.0
        %706 = vmatpush.msra.mxu0 0.0
        %707 = vmatpush.msra.mxu0 0.0
        %708 = vmatpush.msra.mxu0 0.0
        %709 = vmatpush.msra.mxu0 0.0
        %710 = vmatpush.msra.mxu0 0.0
        %711 = vmatpush.msra.mxu0 %v691
        %712 = vmatmul.f32.gmra.mxu0 %v688
        %v713 = vpop.f32.mrf.mxu0
        %v714 = vadd.f32 0.0, %v713
        %715 = vdwg.mxu0
        %716 = vmatpush.msra.mxu0 0.0
        %717 = vmatpush.msra.mxu0 0.0
        %718 = vmatpush.msra.mxu0 0.0
        %719 = vmatpush.msra.mxu0 0.0
        %720 = vmatpush.msra.mxu0 0.0
        %721 = vmatpush.msra.mxu0 0.0
        %722 = vmatpush.msra.mxu0 0.0
        %723 = vmatpush.msra.mxu0 0.0
        %724 = vmatpush.msra.mxu0 0.0
        %725 = vmatpush.msra.mxu0 0.0
        %726 = vmatpush.msra.mxu0 0.0
        %727 = vmatpush.msra.mxu0 0.0
        %728 = vmatpush.msra.mxu0 0.0
        %729 = vmatpush.msra.mxu0 0.0
        %730 = vmatpush.msra.mxu0 0.0
        %731 = vmatpush.msra.mxu0 %v694
        %732 = vmatmul.f32.gmra.mxu0 %v688
        %v733 = vpop.f32.mrf.mxu0
        %v734 = vadd.f32 0.0, %v733
        %735 = vdwg.mxu0
        %v736 = vadd.f32 %v661, %v714
        %v737 = vadd.f32 %v662, %v734
        %738 = vrot.lane.b32.xlu0 %v684, 116
        %v739 = vpop.permute.xlu0 %738
        %740 = vst [vmem:[#allocation1] ss:$2 sm:$0xff] %v439
        %v741 = vld.sshfl [vmem:[#allocation1] sm:$0xff pattern:$0x75316420]
        %v742 = vld.sshfl [vmem:[#allocation1 + $0x8] sm:$0xff pattern:$0x75316420]
        %v743 = vsel %vm489, %v739, 0
        %v745 = vsel %vm492, %v741, 0
        %v747 = vsel %vm492, %v742, 0
        %749 = vmatpush.msra.mxu0 0.0
        %750 = vmatpush.msra.mxu0 0.0
        %751 = vmatpush.msra.mxu0 0.0
        %752 = vmatpush.msra.mxu0 0.0
        %753 = vmatpush.msra.mxu0 0.0
        %754 = vmatpush.msra.mxu0 0.0
        %755 = vmatpush.msra.mxu0 0.0
        %756 = vmatpush.msra.mxu0 0.0
        %757 = vmatpush.msra.mxu0 0.0
        %758 = vmatpush.msra.mxu0 0.0
        %759 = vmatpush.msra.mxu0 0.0
        %760 = vmatpush.msra.mxu0 0.0
        %761 = vmatpush.msra.mxu0 0.0
        %762 = vmatpush.msra.mxu0 0.0
        %763 = vmatpush.msra.mxu0 0.0
        %764 = vmatpush.msra.mxu0 %v745
        %765 = vmatmul.f32.gmra.mxu0 %v743
        %v766 = vpop.f32.mrf.mxu0
        %v767 = vadd.f32 0.0, %v766
        %768 = vdwg.mxu0
        %769 = vmatpush.msra.mxu0 0.0
        %770 = vmatpush.msra.mxu0 0.0
        %771 = vmatpush.msra.mxu0 0.0
        %772 = vmatpush.msra.mxu0 0.0
        %773 = vmatpush.msra.mxu0 0.0
        %774 = vmatpush.msra.mxu0 0.0
        %775 = vmatpush.msra.mxu0 0.0
        %776 = vmatpush.msra.mxu0 0.0
        %777 = vmatpush.msra.mxu0 0.0
        %778 = vmatpush.msra.mxu0 0.0
        %779 = vmatpush.msra.mxu0 0.0
        %780 = vmatpush.msra.mxu0 0.0
        %781 = vmatpush.msra.mxu0 0.0
        %782 = vmatpush.msra.mxu0 0.0
        %783 = vmatpush.msra.mxu0 0.0
        %784 = vmatpush.msra.mxu0 %v747
        %785 = vmatmul.f32.gmra.mxu0 %v743
        %v786 = vpop.f32.mrf.mxu0
        %v787 = vadd.f32 0.0, %v786
        %788 = vdwg.mxu0
        %v789 = vadd.f32 %v736, %v767
        %v790 = vadd.f32 %v737, %v787
        %791 = vst [vmem:[#allocation1] ss:$2 sm:$0xff] %v439
        %v792 = vld.sshfl [vmem:[#allocation1] sm:$0xff pattern:$0x75316420]
        %v793 = vld.sshfl [vmem:[#allocation1 + $0x8] sm:$0xff pattern:$0x75316420]
        %796 = vrot.lane.b32.xlu0 %v792, 127
        %v797 = vpop.permute.xlu0 %796
        %798 = vrot.lane.b32.xlu0 %v793, 127
        %v799 = vpop.permute.xlu0 %798
        %vm800 = vcmp.lt.s32.totalorder %v451, 127
        %v801 = vsel %vm800, %v797, %v799
        %v802 = vsel %vm800, %v799, %v797
        %s803 = scalar_lea.vmem %s1, 10
        %v804 = vld [vmem:[%s803] sm:$0x3]
        %v806 = vperm.slane %v804, 0
        %v807 = vperm.slane %v804, 1
        %v810 = vmul.f32 %v801, %v806
        %v811 = vmul.f32 %v802, %v807
        %v812 = vld [vmem:[%s2] sm:$0xff]
        %814 = vrot.lane.b32.xlu0 %v812, 113
        %v815 = vpop.permute.xlu0 %814
        %v816 = vsel %vm489, %v815, 0
        %v819 = vsel %vm492, %v810, 0
        %v822 = vsel %vm492, %v811, 0
        %824 = vmatpush.msra.mxu0 0.0
        %825 = vmatpush.msra.mxu0 0.0
        %826 = vmatpush.msra.mxu0 0.0
        %827 = vmatpush.msra.mxu0 0.0
        %828 = vmatpush.msra.mxu0 0.0
        %829 = vmatpush.msra.mxu0 0.0
        %830 = vmatpush.msra.mxu0 0.0
        %831 = vmatpush.msra.mxu0 0.0
        %832 = vmatpush.msra.mxu0 0.0
        %833 = vmatpush.msra.mxu0 0.0
        %834 = vmatpush.msra.mxu0 0.0
        %835 = vmatpush.msra.mxu0 0.0
        %836 = vmatpush.msra.mxu0 0.0
        %837 = vmatpush.msra.mxu0 0.0
        %838 = vmatpush.msra.mxu0 0.0
        %839 = vmatpush.msra.mxu0 %v819
        %840 = vmatmul.f32.gmra.mxu0 %v816
        %v841 = vpop.f32.mrf.mxu0
        %v842 = vadd.f32 0.0, %v841
        %843 = vdwg.mxu0
        %844 = vmatpush.msra.mxu0 0.0
        %845 = vmatpush.msra.mxu0 0.0
        %846 = vmatpush.msra.mxu0 0.0
        %847 = vmatpush.msra.mxu0 0.0
        %848 = vmatpush.msra.mxu0 0.0
        %849 = vmatpush.msra.mxu0 0.0
        %850 = vmatpush.msra.mxu0 0.0
        %851 = vmatpush.msra.mxu0 0.0
        %852 = vmatpush.msra.mxu0 0.0
        %853 = vmatpush.msra.mxu0 0.0
        %854 = vmatpush.msra.mxu0 0.0
        %855 = vmatpush.msra.mxu0 0.0
        %856 = vmatpush.msra.mxu0 0.0
        %857 = vmatpush.msra.mxu0 0.0
        %858 = vmatpush.msra.mxu0 0.0
        %859 = vmatpush.msra.mxu0 %v822
        %860 = vmatmul.f32.gmra.mxu0 %v816
        %v861 = vpop.f32.mrf.mxu0
        %v862 = vadd.f32 0.0, %v861
        %863 = vdwg.mxu0
        %v864 = vadd.f32 %v789, %v842
        %v865 = vadd.f32 %v790, %v862
        %866 = vst [vmem:[#allocation1] ss:$2 sm:$0xff] %v439
        %v867 = vld.sshfl [vmem:[#allocation1] sm:$0xff pattern:$0x75316420]
        %v868 = vld.sshfl [vmem:[#allocation1 + $0x8] sm:$0xff pattern:$0x75316420]
        %871 = vrot.lane.b32.xlu0 %v867, 113
        %v872 = vpop.permute.xlu0 %871
        %873 = vrot.lane.b32.xlu0 %v868, 113
        %v874 = vpop.permute.xlu0 %873
        %vm875 = vcmp.lt.s32.totalorder %v451, 113
        %v876 = vsel %vm875, %v872, %v874
        %v877 = vsel %vm875, %v874, %v872
        %s878 = scalar_lea.vmem %s1, 12
        %v879 = vld [vmem:[%s878] sm:$0x3]
        %v881 = vperm.slane %v879, 0
        %v882 = vperm.slane %v879, 1
        %v885 = vmul.f32 %v876, %v881
        %v886 = vmul.f32 %v877, %v882
        %v887 = vld [vmem:[%s2] sm:$0xff]
        %889 = vrot.lane.b32.xlu0 %v887, 110
        %v890 = vpop.permute.xlu0 %889
        %v891 = vsel %vm489, %v890, 0
        %v894 = vsel %vm492, %v885, 0
        %v897 = vsel %vm492, %v886, 0
        %899 = vmatpush.msra.mxu0 0.0
        %900 = vmatpush.msra.mxu0 0.0
        %901 = vmatpush.msra.mxu0 0.0
        %902 = vmatpush.msra.mxu0 0.0
        %903 = vmatpush.msra.mxu0 0.0
        %904 = vmatpush.msra.mxu0 0.0
        %905 = vmatpush.msra.mxu0 0.0
        %906 = vmatpush.msra.mxu0 0.0
        %907 = vmatpush.msra.mxu0 0.0
        %908 = vmatpush.msra.mxu0 0.0
        %909 = vmatpush.msra.mxu0 0.0
        %910 = vmatpush.msra.mxu0 0.0
        %911 = vmatpush.msra.mxu0 0.0
        %912 = vmatpush.msra.mxu0 0.0
        %913 = vmatpush.msra.mxu0 0.0
        %914 = vmatpush.msra.mxu0 %v894
        %915 = vmatmul.f32.gmra.mxu0 %v891
        %v916 = vpop.f32.mrf.mxu0
        %v917 = vadd.f32 0.0, %v916
        %918 = vdwg.mxu0
        %919 = vmatpush.msra.mxu0 0.0
        %920 = vmatpush.msra.mxu0 0.0
        %921 = vmatpush.msra.mxu0 0.0
        %922 = vmatpush.msra.mxu0 0.0
        %923 = vmatpush.msra.mxu0 0.0
        %924 = vmatpush.msra.mxu0 0.0
        %925 = vmatpush.msra.mxu0 0.0
        %926 = vmatpush.msra.mxu0 0.0
        %927 = vmatpush.msra.mxu0 0.0
        %928 = vmatpush.msra.mxu0 0.0
        %929 = vmatpush.msra.mxu0 0.0
        %930 = vmatpush.msra.mxu0 0.0
        %931 = vmatpush.msra.mxu0 0.0
        %932 = vmatpush.msra.mxu0 0.0
        %933 = vmatpush.msra.mxu0 0.0
        %934 = vmatpush.msra.mxu0 %v897
        %935 = vmatmul.f32.gmra.mxu0 %v891
        %v936 = vpop.f32.mrf.mxu0
        %v937 = vadd.f32 0.0, %v936
        %938 = vdwg.mxu0
        %v939 = vadd.f32 %v864, %v917
        %v940 = vadd.f32 %v865, %v937
        %941 = vst [vmem:[#allocation1] ss:$2 sm:$0xff] %v439
        %v942 = vld.sshfl [vmem:[#allocation1] sm:$0xff pattern:$0x75316420]
        %v943 = vld.sshfl [vmem:[#allocation1 + $0x8] sm:$0xff pattern:$0x75316420]
        %946 = vrot.lane.b32.xlu0 %v942, 112
        %v947 = vpop.permute.xlu0 %946
        %948 = vrot.lane.b32.xlu0 %v943, 112
        %v949 = vpop.permute.xlu0 %948
        %vm950 = vcmp.lt.s32.totalorder %v451, 112
        %v951 = vsel %vm950, %v947, %v949
        %v952 = vsel %vm950, %v949, %v947
        %s953 = scalar_lea.vmem %s1, 14
        %v954 = vld [vmem:[%s953] sm:$0x3]
        %v956 = vperm.slane %v954, 0
        %v957 = vperm.slane %v954, 1
        %v960 = vmul.f32 %v951, %v956
        %v961 = vmul.f32 %v952, %v957
        %v962 = vld [vmem:[%s2] sm:$0xff]
        %964 = vrot.lane.b32.xlu0 %v962, 107
        %v965 = vpop.permute.xlu0 %964
        %v966 = vsel %vm489, %v965, 0
        %v969 = vsel %vm492, %v960, 0
        %v972 = vsel %vm492, %v961, 0
        %974 = vmatpush.msra.mxu0 0.0
        %975 = vmatpush.msra.mxu0 0.0
        %976 = vmatpush.msra.mxu0 0.0
        %977 = vmatpush.msra.mxu0 0.0
        %978 = vmatpush.msra.mxu0 0.0
        %979 = vmatpush.msra.mxu0 0.0
        %980 = vmatpush.msra.mxu0 0.0
        %981 = vmatpush.msra.mxu0 0.0
        %982 = vmatpush.msra.mxu0 0.0
        %983 = vmatpush.msra.mxu0 0.0
        %984 = vmatpush.msra.mxu0 0.0
        %985 = vmatpush.msra.mxu0 0.0
        %986 = vmatpush.msra.mxu0 0.0
        %987 = vmatpush.msra.mxu0 0.0
        %988 = vmatpush.msra.mxu0 0.0
        %989 = vmatpush.msra.mxu0 %v969
        %990 = vmatmul.f32.gmra.mxu0 %v966
        %v991 = vpop.f32.mrf.mxu0
        %v992 = vadd.f32 0.0, %v991
        %993 = vdwg.mxu0
        %994 = vmatpush.msra.mxu0 0.0
        %995 = vmatpush.msra.mxu0 0.0
        %996 = vmatpush.msra.mxu0 0.0
        %997 = vmatpush.msra.mxu0 0.0
        %998 = vmatpush.msra.mxu0 0.0
        %999 = vmatpush.msra.mxu0 0.0
        %1000 = vmatpush.msra.mxu0 0.0
        %1001 = vmatpush.msra.mxu0 0.0
        %1002 = vmatpush.msra.mxu0 0.0
        %1003 = vmatpush.msra.mxu0 0.0
        %1004 = vmatpush.msra.mxu0 0.0
        %1005 = vmatpush.msra.mxu0 0.0
        %1006 = vmatpush.msra.mxu0 0.0
        %1007 = vmatpush.msra.mxu0 0.0
        %1008 = vmatpush.msra.mxu0 0.0
        %1009 = vmatpush.msra.mxu0 %v972
        %1010 = vmatmul.f32.gmra.mxu0 %v966
        %v1011 = vpop.f32.mrf.mxu0
        %v1012 = vadd.f32 0.0, %v1011
        %1013 = vdwg.mxu0
        %v1014 = vadd.f32 %v939, %v992
        %v1015 = vadd.f32 %v940, %v1012
        %1016 = vst [vmem:[#allocation1] ss:$2 sm:$0xff] %v439
        %v1017 = vld.sshfl [vmem:[#allocation1] sm:$0xff pattern:$0x75316420]
        %v1018 = vld.sshfl [vmem:[#allocation1 + $0x8] sm:$0xff pattern:$0x75316420]
        %1021 = vrot.lane.b32.xlu0 %v1017, 111
        %v1022 = vpop.permute.xlu0 %1021
        %1023 = vrot.lane.b32.xlu0 %v1018, 111
        %v1024 = vpop.permute.xlu0 %1023
        %vm1025 = vcmp.lt.s32.totalorder %v451, 111
        %v1026 = vsel %vm1025, %v1022, %v1024
        %v1027 = vsel %vm1025, %v1024, %v1022
        %s1028 = scalar_lea.vmem %s1, 16
        %v1029 = vld [vmem:[%s1028] sm:$0x3]
        %v1031 = vperm.slane %v1029, 0
        %v1032 = vperm.slane %v1029, 1
        %v1035 = vmul.f32 %v1026, %v1031
        %v1036 = vmul.f32 %v1027, %v1032
        %v1037 = vld [vmem:[%s2] sm:$0xff]
        %1039 = vrot.lane.b32.xlu0 %v1037, 104
        %v1040 = vpop.permute.xlu0 %1039
        %v1041 = vsel %vm489, %v1040, 0
        %v1044 = vsel %vm492, %v1035, 0
        %v1047 = vsel %vm492, %v1036, 0
        %1049 = vmatpush.msra.mxu0 0.0
        %1050 = vmatpush.msra.mxu0 0.0
        %1051 = vmatpush.msra.mxu0 0.0
        %1052 = vmatpush.msra.mxu0 0.0
        %1053 = vmatpush.msra.mxu0 0.0
        %1054 = vmatpush.msra.mxu0 0.0
        %1055 = vmatpush.msra.mxu0 0.0
        %1056 = vmatpush.msra.mxu0 0.0
        %1057 = vmatpush.msra.mxu0 0.0
        %1058 = vmatpush.msra.mxu0 0.0
        %1059 = vmatpush.msra.mxu0 0.0
        %1060 = vmatpush.msra.mxu0 0.0
        %1061 = vmatpush.msra.mxu0 0.0
        %1062 = vmatpush.msra.mxu0 0.0
        %1063 = vmatpush.msra.mxu0 0.0
        %1064 = vmatpush.msra.mxu0 %v1044
        %1065 = vmatmul.f32.gmra.mxu0 %v1041
        %v1066 = vpop.f32.mrf.mxu0
        %v1067 = vadd.f32 0.0, %v1066
        %1068 = vdwg.mxu0
        %1069 = vmatpush.msra.mxu0 0.0
        %1070 = vmatpush.msra.mxu0 0.0
        %1071 = vmatpush.msra.mxu0 0.0
        %1072 = vmatpush.msra.mxu0 0.0
        %1073 = vmatpush.msra.mxu0 0.0
        %1074 = vmatpush.msra.mxu0 0.0
        %1075 = vmatpush.msra.mxu0 0.0
        %1076 = vmatpush.msra.mxu0 0.0
        %1077 = vmatpush.msra.mxu0 0.0
        %1078 = vmatpush.msra.mxu0 0.0
        %1079 = vmatpush.msra.mxu0 0.0
        %1080 = vmatpush.msra.mxu0 0.0
        %1081 = vmatpush.msra.mxu0 0.0
        %1082 = vmatpush.msra.mxu0 0.0
        %1083 = vmatpush.msra.mxu0 0.0
        %1084 = vmatpush.msra.mxu0 %v1047
        %1085 = vmatmul.f32.gmra.mxu0 %v1041
        %v1086 = vpop.f32.mrf.mxu0
        %v1087 = vadd.f32 0.0, %v1086
        %1088 = vdwg.mxu0
        %v1089 = vadd.f32 %v1014, %v1067
        %v1090 = vadd.f32 %v1015, %v1087
        %v1091 = vld [vmem:[%s3] sm:$0xff]
        %1093 = vset.pattern.permute.xlu0 0
        %1094 = vperm.xlu0 %1093, %v1091
        %v1095 = vpop.permute.xlu0 %1094
        %v1097 = vadd.f32 %v1089, %v1095
        %v1098 = vadd.f32 %v1090, %v1095
        %v1099 = vmax.f32 %v1097, 0.0
        %v1100 = vmax.f32 %v1098, 0.0
        %v1101 = vld [vmem:[%s4] sm:$0xff]
        %v1102 = vld [vmem:[%s4 + $0x8] sm:$0xff]
        %v1103 = vld [vmem:[%s5] sm:$0xff]
        %v1104 = vld [vmem:[%s5 + $0x8] sm:$0xff]
        %1106 = vset.pattern.permute.xlu0 0
        %1107 = vperm.xlu0 %1106, %v1103
        %v1108 = vpop.permute.xlu0 %1107
        %1111 = vset.pattern.permute.xlu0 0
        %1112 = vperm.xlu0 %1111, %v1104
        %v1113 = vpop.permute.xlu0 %1112
        %vm1115 = vcmask 64512
        %v1117 = vsel %vm1115, %v1101, 0
        %v1120 = vsel %vm1115, %v1102, 0
        %1122 = vmatpush.msra.mxu0 0.0
        %1123 = vmatpush.msra.mxu0 0.0
        %1124 = vmatpush.msra.mxu0 0.0
        %1125 = vmatpush.msra.mxu0 0.0
        %1126 = vmatpush.msra.mxu0 0.0
        %1127 = vmatpush.msra.mxu0 0.0
        %1128 = vmatpush.msra.mxu0 0.0
        %1129 = vmatpush.msra.mxu0 0.0
        %1130 = vmatpush.msra.mxu0 0.0
        %1131 = vmatpush.msra.mxu0 0.0
        %1132 = vmatpush.msra.mxu0 0.0
        %1133 = vmatpush.msra.mxu0 0.0
        %1134 = vmatpush.msra.mxu0 0.0
        %1135 = vmatpush.msra.mxu0 0.0
        %1136 = vmatpush.msra.mxu0 0.0
        %1137 = vmatpush.msra.mxu0 %v1099
        %1138 = vmatmul.f32.gmra.mxu0 %v1117
        %v1139 = vpop.f32.mrf.mxu0
        %v1140 = vadd.f32 %v1108, %v1139
        %1141 = vmatmul.f32.gmra.mxu0 %v1120
        %v1142 = vpop.f32.mrf.mxu0
        %v1143 = vadd.f32 %v1113, %v1142
        %1144 = vdwg.mxu0
        %1145 = vmatpush.msra.mxu0 0.0
        %1146 = vmatpush.msra.mxu0 0.0
        %1147 = vmatpush.msra.mxu0 0.0
        %1148 = vmatpush.msra.mxu0 0.0
        %1149 = vmatpush.msra.mxu0 0.0
        %1150 = vmatpush.msra.mxu0 0.0
        %1151 = vmatpush.msra.mxu0 0.0
        %1152 = vmatpush.msra.mxu0 0.0
        %1153 = vmatpush.msra.mxu0 0.0
        %1154 = vmatpush.msra.mxu0 0.0
        %1155 = vmatpush.msra.mxu0 0.0
        %1156 = vmatpush.msra.mxu0 0.0
        %1157 = vmatpush.msra.mxu0 0.0
        %1158 = vmatpush.msra.mxu0 0.0
        %1159 = vmatpush.msra.mxu0 0.0
        %1160 = vmatpush.msra.mxu0 %v1100
        %1161 = vmatmul.f32.gmra.mxu0 %v1117
        %v1162 = vpop.f32.mrf.mxu0
        %v1163 = vadd.f32 %v1108, %v1162
        %1164 = vmatmul.f32.gmra.mxu0 %v1120
        %v1165 = vpop.f32.mrf.mxu0
        %v1166 = vadd.f32 %v1113, %v1165
        %1167 = vdwg.mxu0
        %v1168 = vmax.f32 %v1140, 0.0
        %v1169 = vmax.f32 %v1163, 0.0
        %v1170 = vmax.f32 %v1143, 0.0
        %v1171 = vmax.f32 %v1166, 0.0
        %1172 = vrot.lane.b32.xlu0 %v1168, 17
        %v1173 = vpop.permute.xlu0 %1172
        %1174 = vrot.lane.b32.xlu0 %v1170, 17
        %v1175 = vpop.permute.xlu0 %1174
        %1176 = vrot.lane.b32.xlu0 %v1169, 17
        %v1177 = vpop.permute.xlu0 %1176
        %1178 = vrot.lane.b32.xlu0 %v1171, 17
        %v1179 = vpop.permute.xlu0 %1178
        %v1180 = vsel %vm452, %v1173, %v1177
        %v1181 = vsel %vm452, %v1175, %v1179
        %v1182 = vsel %vm452, %v1177, %v1173
        %v1183 = vsel %vm452, %v1179, %v1175
        %v1184 = vmul.f32 %v1182, %v457
        %v1185 = vmul.f32 %v1180, %v458
        %v1186 = vmul.f32 %v1183, %v457
        %v1187 = vmul.f32 %v1181, %v458
        %v1188 = vld [vmem:[%s6] sm:$0xff]
        %v1189 = vld [vmem:[%s6 + $0x10] sm:$0xff]
        %1190 = vrot.lane.b32.xlu0 %v1168, 16
        %v1191 = vpop.permute.xlu0 %1190
        %1192 = vrot.lane.b32.xlu0 %v1170, 16
        %v1193 = vpop.permute.xlu0 %1192
        %1194 = vrot.lane.b32.xlu0 %v1169, 16
        %v1195 = vpop.permute.xlu0 %1194
        %1196 = vrot.lane.b32.xlu0 %v1171, 16
        %v1197 = vpop.permute.xlu0 %1196
        %v1198 = vsel %vm473, %v1191, %v1195
        %v1199 = vsel %vm473, %v1193, %v1197
        %v1200 = vsel %vm473, %v1195, %v1191
        %v1201 = vsel %vm473, %v1197, %v1193
        %v1202 = vmul.f32 %v1200, %v479
        %v1203 = vmul.f32 %v1198, %v480
        %v1204 = vmul.f32 %v1201, %v479
        %v1205 = vmul.f32 %v1199, %v480
        %1208 = vrot.lane.b32.xlu0 %v1188, 112
        %v1209 = vpop.permute.xlu0 %1208
        %1210 = vrot.lane.b32.xlu0 %v1189, 112
        %v1211 = vpop.permute.xlu0 %1210
        %vm1212 = vcmask 130048
        %v1213 = vsel %vm1212, %v1209, 0
        %v1215 = vsel %vm1212, %v1211, 0
        %1217 = vmatpush.msra.mxu0 0.0
        %1218 = vmatpush.msra.mxu0 0.0
        %1219 = vmatpush.msra.mxu0 0.0
        %1220 = vmatpush.msra.mxu0 0.0
        %1221 = vmatpush.msra.mxu0 0.0
        %1222 = vmatpush.msra.mxu0 0.0
        %1223 = vmatpush.msra.mxu0 0.0
        %1224 = vmatpush.msra.mxu0 0.0
        %1225 = vmatpush.msra.mxu0 0.0
        %1226 = vmatpush.msra.mxu0 0.0
        %1227 = vmatpush.msra.mxu0 0.0
        %1228 = vmatpush.msra.mxu0 0.0
        %1229 = vmatpush.msra.mxu0 0.0
        %1230 = vmatpush.msra.mxu0 0.0
        %1231 = vmatpush.msra.mxu0 %v1204
        %1232 = vmatpush.msra.mxu0 %v1202
        %1233 = vmatmul.f32.gmra.mxu0 %v1213
        %v1234 = vpop.f32.mrf.mxu0
        %v1235 = vadd.f32 0.0, %v1234
        %1236 = vmatmul.f32.gmra.mxu0 %v1215
        %v1237 = vpop.f32.mrf.mxu0
        %v1238 = vadd.f32 0.0, %v1237
        %1239 = vdwg.mxu0
        %1240 = vmatpush.msra.mxu0 0.0
        %1241 = vmatpush.msra.mxu0 0.0
        %1242 = vmatpush.msra.mxu0 0.0
        %1243 = vmatpush.msra.mxu0 0.0
        %1244 = vmatpush.msra.mxu0 0.0
        %1245 = vmatpush.msra.mxu0 0.0
        %1246 = vmatpush.msra.mxu0 0.0
        %1247 = vmatpush.msra.mxu0 0.0
        %1248 = vmatpush.msra.mxu0 0.0
        %1249 = vmatpush.msra.mxu0 0.0
        %1250 = vmatpush.msra.mxu0 0.0
        %1251 = vmatpush.msra.mxu0 0.0
        %1252 = vmatpush.msra.mxu0 0.0
        %1253 = vmatpush.msra.mxu0 0.0
        %1254 = vmatpush.msra.mxu0 %v1205
        %1255 = vmatpush.msra.mxu0 %v1203
        %1256 = vmatmul.f32.gmra.mxu0 %v1213
        %v1257 = vpop.f32.mrf.mxu0
        %v1258 = vadd.f32 0.0, %v1257
        %1259 = vmatmul.f32.gmra.mxu0 %v1215
        %v1260 = vpop.f32.mrf.mxu0
        %v1261 = vadd.f32 0.0, %v1260
        %1262 = vdwg.mxu0
        %v1263 = vsel %vm1212, %v1188, 0
        %v1265 = vsel %vm1212, %v1189, 0
        %1267 = vmatpush.msra.mxu0 0.0
        %1268 = vmatpush.msra.mxu0 0.0
        %1269 = vmatpush.msra.mxu0 0.0
        %1270 = vmatpush.msra.mxu0 0.0
        %1271 = vmatpush.msra.mxu0 0.0
        %1272 = vmatpush.msra.mxu0 0.0
        %1273 = vmatpush.msra.mxu0 0.0
        %1274 = vmatpush.msra.mxu0 0.0
        %1275 = vmatpush.msra.mxu0 0.0
        %1276 = vmatpush.msra.mxu0 0.0
        %1277 = vmatpush.msra.mxu0 0.0
        %1278 = vmatpush.msra.mxu0 0.0
        %1279 = vmatpush.msra.mxu0 0.0
        %1280 = vmatpush.msra.mxu0 0.0
        %1281 = vmatpush.msra.mxu0 %v1186
        %1282 = vmatpush.msra.mxu0 %v1184
        %1283 = vmatmul.f32.gmra.mxu0 %v1263
        %v1284 = vpop.f32.mrf.mxu0
        %v1285 = vadd.f32 %v1235, %v1284
        %1286 = vmatmul.f32.gmra.mxu0 %v1265
        %v1287 = vpop.f32.mrf.mxu0
        %v1288 = vadd.f32 %v1238, %v1287
        %1289 = vdwg.mxu0
        %1290 = vmatpush.msra.mxu0 0.0
        %1291 = vmatpush.msra.mxu0 0.0
        %1292 = vmatpush.msra.mxu0 0.0
        %1293 = vmatpush.msra.mxu0 0.0
        %1294 = vmatpush.msra.mxu0 0.0
        %1295 = vmatpush.msra.mxu0 0.0
        %1296 = vmatpush.msra.mxu0 0.0
        %1297 = vmatpush.msra.mxu0 0.0
        %1298 = vmatpush.msra.mxu0 0.0
        %1299 = vmatpush.msra.mxu0 0.0
        %1300 = vmatpush.msra.mxu0 0.0
        %1301 = vmatpush.msra.mxu0 0.0
        %1302 = vmatpush.msra.mxu0 0.0
        %1303 = vmatpush.msra.mxu0 0.0
        %1304 = vmatpush.msra.mxu0 %v1187
        %1305 = vmatpush.msra.mxu0 %v1185
        %1306 = vmatmul.f32.gmra.mxu0 %v1263
        %v1307 = vpop.f32.mrf.mxu0
        %v1308 = vadd.f32 %v1258, %v1307
        %1309 = vmatmul.f32.gmra.mxu0 %v1265
        %v1310 = vpop.f32.mrf.mxu0
        %v1311 = vadd.f32 %v1261, %v1310
        %1312 = vdwg.mxu0
        %1313 = vrot.lane.b32.xlu0 %v1168, 15
        %v1314 = vpop.permute.xlu0 %1313
        %1315 = vrot.lane.b32.xlu0 %v1170, 15
        %v1316 = vpop.permute.xlu0 %1315
        %1317 = vrot.lane.b32.xlu0 %v1169, 15
        %v1318 = vpop.permute.xlu0 %1317
        %1319 = vrot.lane.b32.xlu0 %v1171, 15
        %v1320 = vpop.permute.xlu0 %1319
        %v1321 = vsel %vm597, %v1314, %v1318
        %v1322 = vsel %vm597, %v1316, %v1320
        %v1323 = vsel %vm597, %v1318, %v1314
        %v1324 = vsel %vm597, %v1320, %v1316
        %v1325 = vmul.f32 %v1323, %v603
        %v1326 = vmul.f32 %v1321, %v604
        %v1327 = vmul.f32 %v1324, %v603
        %v1328 = vmul.f32 %v1322, %v604
        %1329 = vrot.lane.b32.xlu0 %v1188, 96
        %v1330 = vpop.permute.xlu0 %1329
        %1331 = vrot.lane.b32.xlu0 %v1189, 96
        %v1332 = vpop.permute.xlu0 %1331
        %v1333 = vsel %vm1212, %v1330, 0
        %v1335 = vsel %vm1212, %v1332, 0
        %1337 = vmatpush.msra.mxu0 0.0
        %1338 = vmatpush.msra.mxu0 0.0
        %1339 = vmatpush.msra.mxu0 0.0
        %1340 = vmatpush.msra.mxu0 0.0
        %1341 = vmatpush.msra.mxu0 0.0
        %1342 = vmatpush.msra.mxu0 0.0
        %1343 = vmatpush.msra.mxu0 0.0
        %1344 = vmatpush.msra.mxu0 0.0
        %1345 = vmatpush.msra.mxu0 0.0
        %1346 = vmatpush.msra.mxu0 0.0
        %1347 = vmatpush.msra.mxu0 0.0
        %1348 = vmatpush.msra.mxu0 0.0
        %1349 = vmatpush.msra.mxu0 0.0
        %1350 = vmatpush.msra.mxu0 0.0
        %1351 = vmatpush.msra.mxu0 %v1327
        %1352 = vmatpush.msra.mxu0 %v1325
        %1353 = vmatmul.f32.gmra.mxu0 %v1333
        %v1354 = vpop.f32.mrf.mxu0
        %v1355 = vadd.f32 0.0, %v1354
        %1356 = vmatmul.f32.gmra.mxu0 %v1335
        %v1357 = vpop.f32.mrf.mxu0
        %v1358 = vadd.f32 0.0, %v1357
        %1359 = vdwg.mxu0
        %1360 = vmatpush.msra.mxu0 0.0
        %1361 = vmatpush.msra.mxu0 0.0
        %1362 = vmatpush.msra.mxu0 0.0
        %1363 = vmatpush.msra.mxu0 0.0
        %1364 = vmatpush.msra.mxu0 0.0
        %1365 = vmatpush.msra.mxu0 0.0
        %1366 = vmatpush.msra.mxu0 0.0
        %1367 = vmatpush.msra.mxu0 0.0
        %1368 = vmatpush.msra.mxu0 0.0
        %1369 = vmatpush.msra.mxu0 0.0
        %1370 = vmatpush.msra.mxu0 0.0
        %1371 = vmatpush.msra.mxu0 0.0
        %1372 = vmatpush.msra.mxu0 0.0
        %1373 = vmatpush.msra.mxu0 0.0
        %1374 = vmatpush.msra.mxu0 %v1328
        %1375 = vmatpush.msra.mxu0 %v1326
        %1376 = vmatmul.f32.gmra.mxu0 %v1333
        %v1377 = vpop.f32.mrf.mxu0
        %v1378 = vadd.f32 0.0, %v1377
        %1379 = vmatmul.f32.gmra.mxu0 %v1335
        %v1380 = vpop.f32.mrf.mxu0
        %v1381 = vadd.f32 0.0, %v1380
        %1382 = vdwg.mxu0
        %v1383 = vadd.f32 %v1285, %v1355
        %v1384 = vadd.f32 %v1308, %v1378
        %v1385 = vadd.f32 %v1288, %v1358
        %v1386 = vadd.f32 %v1311, %v1381
        %1387 = vrot.lane.b32.xlu0 %v1168, 1
        %v1388 = vpop.permute.xlu0 %1387
        %1389 = vrot.lane.b32.xlu0 %v1170, 1
        %v1390 = vpop.permute.xlu0 %1389
        %1391 = vrot.lane.b32.xlu0 %v1169, 1
        %v1392 = vpop.permute.xlu0 %1391
        %1393 = vrot.lane.b32.xlu0 %v1171, 1
        %v1394 = vpop.permute.xlu0 %1393
        %v1395 = vsel %vm672, %v1388, %v1392
        %v1396 = vsel %vm672, %v1390, %v1394
        %v1397 = vsel %vm672, %v1392, %v1388
        %v1398 = vsel %vm672, %v1394, %v1390
        %v1399 = vmul.f32 %v1397, %v678
        %v1400 = vmul.f32 %v1395, %v679
        %v1401 = vmul.f32 %v1398, %v678
        %v1402 = vmul.f32 %v1396, %v679
        %1403 = vrot.lane.b32.xlu0 %v1188, 80
        %v1404 = vpop.permute.xlu0 %1403
        %1405 = vrot.lane.b32.xlu0 %v1189, 80
        %v1406 = vpop.permute.xlu0 %1405
        %v1407 = vsel %vm1212, %v1404, 0
        %v1409 = vsel %vm1212, %v1406, 0
        %1411 = vmatpush.msra.mxu0 0.0
        %1412 = vmatpush.msra.mxu0 0.0
        %1413 = vmatpush.msra.mxu0 0.0
        %1414 = vmatpush.msra.mxu0 0.0
        %1415 = vmatpush.msra.mxu0 0.0
        %1416 = vmatpush.msra.mxu0 0.0
        %1417 = vmatpush.msra.mxu0 0.0
        %1418 = vmatpush.msra.mxu0 0.0
        %1419 = vmatpush.msra.mxu0 0.0
        %1420 = vmatpush.msra.mxu0 0.0
        %1421 = vmatpush.msra.mxu0 0.0
        %1422 = vmatpush.msra.mxu0 0.0
        %1423 = vmatpush.msra.mxu0 0.0
        %1424 = vmatpush.msra.mxu0 0.0
        %1425 = vmatpush.msra.mxu0 %v1401
        %1426 = vmatpush.msra.mxu0 %v1399
        %1427 = vmatmul.f32.gmra.mxu0 %v1407
        %v1428 = vpop.f32.mrf.mxu0
        %v1429 = vadd.f32 0.0, %v1428
        %1430 = vmatmul.f32.gmra.mxu0 %v1409
        %v1431 = vpop.f32.mrf.mxu0
        %v1432 = vadd.f32 0.0, %v1431
        %1433 = vdwg.mxu0
        %1434 = vmatpush.msra.mxu0 0.0
        %1435 = vmatpush.msra.mxu0 0.0
        %1436 = vmatpush.msra.mxu0 0.0
        %1437 = vmatpush.msra.mxu0 0.0
        %1438 = vmatpush.msra.mxu0 0.0
        %1439 = vmatpush.msra.mxu0 0.0
        %1440 = vmatpush.msra.mxu0 0.0
        %1441 = vmatpush.msra.mxu0 0.0
        %1442 = vmatpush.msra.mxu0 0.0
        %1443 = vmatpush.msra.mxu0 0.0
        %1444 = vmatpush.msra.mxu0 0.0
        %1445 = vmatpush.msra.mxu0 0.0
        %1446 = vmatpush.msra.mxu0 0.0
        %1447 = vmatpush.msra.mxu0 0.0
        %1448 = vmatpush.msra.mxu0 %v1402
        %1449 = vmatpush.msra.mxu0 %v1400
        %1450 = vmatmul.f32.gmra.mxu0 %v1407
        %v1451 = vpop.f32.mrf.mxu0
        %v1452 = vadd.f32 0.0, %v1451
        %1453 = vmatmul.f32.gmra.mxu0 %v1409
        %v1454 = vpop.f32.mrf.mxu0
        %v1455 = vadd.f32 0.0, %v1454
        %1456 = vdwg.mxu0
        %v1457 = vadd.f32 %v1383, %v1429
        %v1458 = vadd.f32 %v1384, %v1452
        %v1459 = vadd.f32 %v1385, %v1432
        %v1460 = vadd.f32 %v1386, %v1455
        %1461 = vrot.lane.b32.xlu0 %v1188, 64
        %v1462 = vpop.permute.xlu0 %1461
        %1463 = vrot.lane.b32.xlu0 %v1189, 64
        %v1464 = vpop.permute.xlu0 %1463
        %v1465 = vsel %vm1212, %v1462, 0
        %v1467 = vsel %vm1212, %v1464, 0
        %1469 = vmatpush.msra.mxu0 0.0
        %1470 = vmatpush.msra.mxu0 0.0
        %1471 = vmatpush.msra.mxu0 0.0
        %1472 = vmatpush.msra.mxu0 0.0
        %1473 = vmatpush.msra.mxu0 0.0
        %1474 = vmatpush.msra.mxu0 0.0
        %1475 = vmatpush.msra.mxu0 0.0
        %1476 = vmatpush.msra.mxu0 0.0
        %1477 = vmatpush.msra.mxu0 0.0
        %1478 = vmatpush.msra.mxu0 0.0
        %1479 = vmatpush.msra.mxu0 0.0
        %1480 = vmatpush.msra.mxu0 0.0
        %1481 = vmatpush.msra.mxu0 0.0
        %1482 = vmatpush.msra.mxu0 0.0
        %1483 = vmatpush.msra.mxu0 %v1170
        %1484 = vmatpush.msra.mxu0 %v1168
        %1485 = vmatmul.f32.gmra.mxu0 %v1465
        %v1486 = vpop.f32.mrf.mxu0
        %v1487 = vadd.f32 0.0, %v1486
        %1488 = vmatmul.f32.gmra.mxu0 %v1467
        %v1489 = vpop.f32.mrf.mxu0
        %v1490 = vadd.f32 0.0, %v1489
        %1491 = vdwg.mxu0
        %1492 = vmatpush.msra.mxu0 0.0
        %1493 = vmatpush.msra.mxu0 0.0
        %1494 = vmatpush.msra.mxu0 0.0
        %1495 = vmatpush.msra.mxu0 0.0
        %1496 = vmatpush.msra.mxu0 0.0
        %1497 = vmatpush.msra.mxu0 0.0
        %1498 = vmatpush.msra.mxu0 0.0
        %1499 = vmatpush.msra.mxu0 0.0
        %1500 = vmatpush.msra.mxu0 0.0
        %1501 = vmatpush.msra.mxu0 0.0
        %1502 = vmatpush.msra.mxu0 0.0
        %1503 = vmatpush.msra.mxu0 0.0
        %1504 = vmatpush.msra.mxu0 0.0
        %1505 = vmatpush.msra.mxu0 0.0
        %1506 = vmatpush.msra.mxu0 %v1171
        %1507 = vmatpush.msra.mxu0 %v1169
        %1508 = vmatmul.f32.gmra.mxu0 %v1465
        %v1509 = vpop.f32.mrf.mxu0
        %v1510 = vadd.f32 0.0, %v1509
        %1511 = vmatmul.f32.gmra.mxu0 %v1467
        %v1512 = vpop.f32.mrf.mxu0
        %v1513 = vadd.f32 0.0, %v1512
        %1514 = vdwg.mxu0
        %v1515 = vadd.f32 %v1457, %v1487
        %v1516 = vadd.f32 %v1458, %v1510
        %v1517 = vadd.f32 %v1459, %v1490
        %v1518 = vadd.f32 %v1460, %v1513
        %1519 = vrot.lane.b32.xlu0 %v1168, 127
        %v1520 = vpop.permute.xlu0 %1519
        %1521 = vrot.lane.b32.xlu0 %v1170, 127
        %v1522 = vpop.permute.xlu0 %1521
        %1523 = vrot.lane.b32.xlu0 %v1169, 127
        %v1524 = vpop.permute.xlu0 %1523
        %1525 = vrot.lane.b32.xlu0 %v1171, 127
        %v1526 = vpop.permute.xlu0 %1525
        %v1527 = vsel %vm800, %v1520, %v1524
        %v1528 = vsel %vm800, %v1522, %v1526
        %v1529 = vsel %vm800, %v1524, %v1520
        %v1530 = vsel %vm800, %v1526, %v1522
        %v1531 = vmul.f32 %v1527, %v806
        %v1532 = vmul.f32 %v1529, %v807
        %v1533 = vmul.f32 %v1528, %v806
        %v1534 = vmul.f32 %v1530, %v807
        %1535 = vrot.lane.b32.xlu0 %v1188, 48
        %v1536 = vpop.permute.xlu0 %1535
        %1537 = vrot.lane.b32.xlu0 %v1189, 48
        %v1538 = vpop.permute.xlu0 %1537
        %v1539 = vsel %vm1212, %v1536, 0
        %v1541 = vsel %vm1212, %v1538, 0
        %1543 = vmatpush.msra.mxu0 0.0
        %1544 = vmatpush.msra.mxu0 0.0
        %1545 = vmatpush.msra.mxu0 0.0
        %1546 = vmatpush.msra.mxu0 0.0
        %1547 = vmatpush.msra.mxu0 0.0
        %1548 = vmatpush.msra.mxu0 0.0
        %1549 = vmatpush.msra.mxu0 0.0
        %1550 = vmatpush.msra.mxu0 0.0
        %1551 = vmatpush.msra.mxu0 0.0
        %1552 = vmatpush.msra.mxu0 0.0
        %1553 = vmatpush.msra.mxu0 0.0
        %1554 = vmatpush.msra.mxu0 0.0
        %1555 = vmatpush.msra.mxu0 0.0
        %1556 = vmatpush.msra.mxu0 0.0
        %1557 = vmatpush.msra.mxu0 %v1533
        %1558 = vmatpush.msra.mxu0 %v1531
        %1559 = vmatmul.f32.gmra.mxu0 %v1539
        %v1560 = vpop.f32.mrf.mxu0
        %v1561 = vadd.f32 0.0, %v1560
        %1562 = vmatmul.f32.gmra.mxu0 %v1541
        %v1563 = vpop.f32.mrf.mxu0
        %v1564 = vadd.f32 0.0, %v1563
        %1565 = vdwg.mxu0
        %1566 = vmatpush.msra.mxu0 0.0
        %1567 = vmatpush.msra.mxu0 0.0
        %1568 = vmatpush.msra.mxu0 0.0
        %1569 = vmatpush.msra.mxu0 0.0
        %1570 = vmatpush.msra.mxu0 0.0
        %1571 = vmatpush.msra.mxu0 0.0
        %1572 = vmatpush.msra.mxu0 0.0
        %1573 = vmatpush.msra.mxu0 0.0
        %1574 = vmatpush.msra.mxu0 0.0
        %1575 = vmatpush.msra.mxu0 0.0
        %1576 = vmatpush.msra.mxu0 0.0
        %1577 = vmatpush.msra.mxu0 0.0
        %1578 = vmatpush.msra.mxu0 0.0
        %1579 = vmatpush.msra.mxu0 0.0
        %1580 = vmatpush.msra.mxu0 %v1534
        %1581 = vmatpush.msra.mxu0 %v1532
        %1582 = vmatmul.f32.gmra.mxu0 %v1539
        %v1583 = vpop.f32.mrf.mxu0
        %v1584 = vadd.f32 0.0, %v1583
        %1585 = vmatmul.f32.gmra.mxu0 %v1541
        %v1586 = vpop.f32.mrf.mxu0
        %v1587 = vadd.f32 0.0, %v1586
        %1588 = vdwg.mxu0
        %v1589 = vadd.f32 %v1515, %v1561
        %v1590 = vadd.f32 %v1516, %v1584
        %v1591 = vadd.f32 %v1517, %v1564
        %v1592 = vadd.f32 %v1518, %v1587
        %1593 = vrot.lane.b32.xlu0 %v1168, 113
        %v1594 = vpop.permute.xlu0 %1593
        %1595 = vrot.lane.b32.xlu0 %v1170, 113
        %v1596 = vpop.permute.xlu0 %1595
        %1597 = vrot.lane.b32.xlu0 %v1169, 113
        %v1598 = vpop.permute.xlu0 %1597
        %1599 = vrot.lane.b32.xlu0 %v1171, 113
        %v1600 = vpop.permute.xlu0 %1599
        %v1601 = vsel %vm875, %v1594, %v1598
        %v1602 = vsel %vm875, %v1596, %v1600
        %v1603 = vsel %vm875, %v1598, %v1594
        %v1604 = vsel %vm875, %v1600, %v1596
        %v1605 = vmul.f32 %v1601, %v881
        %v1606 = vmul.f32 %v1603, %v882
        %v1607 = vmul.f32 %v1602, %v881
        %v1608 = vmul.f32 %v1604, %v882
        %1609 = vrot.lane.b32.xlu0 %v1188, 32
        %v1610 = vpop.permute.xlu0 %1609
        %1611 = vrot.lane.b32.xlu0 %v1189, 32
        %v1612 = vpop.permute.xlu0 %1611
        %v1613 = vsel %vm1212, %v1610, 0
        %v1615 = vsel %vm1212, %v1612, 0
        %1617 = vmatpush.msra.mxu0 0.0
        %1618 = vmatpush.msra.mxu0 0.0
        %1619 = vmatpush.msra.mxu0 0.0
        %1620 = vmatpush.msra.mxu0 0.0
        %1621 = vmatpush.msra.mxu0 0.0
        %1622 = vmatpush.msra.mxu0 0.0
        %1623 = vmatpush.msra.mxu0 0.0
        %1624 = vmatpush.msra.mxu0 0.0
        %1625 = vmatpush.msra.mxu0 0.0
        %1626 = vmatpush.msra.mxu0 0.0
        %1627 = vmatpush.msra.mxu0 0.0
        %1628 = vmatpush.msra.mxu0 0.0
        %1629 = vmatpush.msra.mxu0 0.0
        %1630 = vmatpush.msra.mxu0 0.0
        %1631 = vmatpush.msra.mxu0 %v1607
        %1632 = vmatpush.msra.mxu0 %v1605
        %1633 = vmatmul.f32.gmra.mxu0 %v1613
        %v1634 = vpop.f32.mrf.mxu0
        %v1635 = vadd.f32 0.0, %v1634
        %1636 = vmatmul.f32.gmra.mxu0 %v1615
        %v1637 = vpop.f32.mrf.mxu0
        %v1638 = vadd.f32 0.0, %v1637
        %1639 = vdwg.mxu0
        %1640 = vmatpush.msra.mxu0 0.0
        %1641 = vmatpush.msra.mxu0 0.0
        %1642 = vmatpush.msra.mxu0 0.0
        %1643 = vmatpush.msra.mxu0 0.0
        %1644 = vmatpush.msra.mxu0 0.0
        %1645 = vmatpush.msra.mxu0 0.0
        %1646 = vmatpush.msra.mxu0 0.0
        %1647 = vmatpush.msra.mxu0 0.0
        %1648 = vmatpush.msra.mxu0 0.0
        %1649 = vmatpush.msra.mxu0 0.0
        %1650 = vmatpush.msra.mxu0 0.0
        %1651 = vmatpush.msra.mxu0 0.0
        %1652 = vmatpush.msra.mxu0 0.0
        %1653 = vmatpush.msra.mxu0 0.0
        %1654 = vmatpush.msra.mxu0 %v1608
        %1655 = vmatpush.msra.mxu0 %v1606
        %1656 = vmatmul.f32.gmra.mxu0 %v1613
        %v1657 = vpop.f32.mrf.mxu0
        %v1658 = vadd.f32 0.0, %v1657
        %1659 = vmatmul.f32.gmra.mxu0 %v1615
        %v1660 = vpop.f32.mrf.mxu0
        %v1661 = vadd.f32 0.0, %v1660
        %1662 = vdwg.mxu0
        %v1663 = vadd.f32 %v1589, %v1635
        %v1664 = vadd.f32 %v1590, %v1658
        %v1665 = vadd.f32 %v1591, %v1638
        %v1666 = vadd.f32 %v1592, %v1661
        %1667 = vrot.lane.b32.xlu0 %v1168, 112
        %v1668 = vpop.permute.xlu0 %1667
        %1669 = vrot.lane.b32.xlu0 %v1170, 112
        %v1670 = vpop.permute.xlu0 %1669
        %1671 = vrot.lane.b32.xlu0 %v1169, 112
        %v1672 = vpop.permute.xlu0 %1671
        %1673 = vrot.lane.b32.xlu0 %v1171, 112
        %v1674 = vpop.permute.xlu0 %1673
        %v1675 = vsel %vm950, %v1668, %v1672
        %v1676 = vsel %vm950, %v1670, %v1674
        %v1677 = vsel %vm950, %v1672, %v1668
        %v1678 = vsel %vm950, %v1674, %v1670
        %v1679 = vmul.f32 %v1675, %v956
        %v1680 = vmul.f32 %v1677, %v957
        %v1681 = vmul.f32 %v1676, %v956
        %v1682 = vmul.f32 %v1678, %v957
        %1683 = vrot.lane.b32.xlu0 %v1188, 16
        %v1684 = vpop.permute.xlu0 %1683
        %1685 = vrot.lane.b32.xlu0 %v1189, 16
        %v1686 = vpop.permute.xlu0 %1685
        %v1687 = vsel %vm1212, %v1684, 0
        %v1689 = vsel %vm1212, %v1686, 0
        %1691 = vmatpush.msra.mxu0 0.0
        %1692 = vmatpush.msra.mxu0 0.0
        %1693 = vmatpush.msra.mxu0 0.0
        %1694 = vmatpush.msra.mxu0 0.0
        %1695 = vmatpush.msra.mxu0 0.0
        %1696 = vmatpush.msra.mxu0 0.0
        %1697 = vmatpush.msra.mxu0 0.0
        %1698 = vmatpush.msra.mxu0 0.0
        %1699 = vmatpush.msra.mxu0 0.0
        %1700 = vmatpush.msra.mxu0 0.0
        %1701 = vmatpush.msra.mxu0 0.0
        %1702 = vmatpush.msra.mxu0 0.0
        %1703 = vmatpush.msra.mxu0 0.0
        %1704 = vmatpush.msra.mxu0 0.0
        %1705 = vmatpush.msra.mxu0 %v1681
        %1706 = vmatpush.msra.mxu0 %v1679
        %1707 = vmatmul.f32.gmra.mxu0 %v1687
        %v1708 = vpop.f32.mrf.mxu0
        %v1709 = vadd.f32 0.0, %v1708
        %1710 = vmatmul.f32.gmra.mxu0 %v1689
        %v1711 = vpop.f32.mrf.mxu0
        %v1712 = vadd.f32 0.0, %v1711
        %1713 = vdwg.mxu0
        %1714 = vmatpush.msra.mxu0 0.0
        %1715 = vmatpush.msra.mxu0 0.0
        %1716 = vmatpush.msra.mxu0 0.0
        %1717 = vmatpush.msra.mxu0 0.0
        %1718 = vmatpush.msra.mxu0 0.0
        %1719 = vmatpush.msra.mxu0 0.0
        %1720 = vmatpush.msra.mxu0 0.0
        %1721 = vmatpush.msra.mxu0 0.0
        %1722 = vmatpush.msra.mxu0 0.0
        %1723 = vmatpush.msra.mxu0 0.0
        %1724 = vmatpush.msra.mxu0 0.0
        %1725 = vmatpush.msra.mxu0 0.0
        %1726 = vmatpush.msra.mxu0 0.0
        %1727 = vmatpush.msra.mxu0 0.0
        %1728 = vmatpush.msra.mxu0 %v1682
        %1729 = vmatpush.msra.mxu0 %v1680
        %1730 = vmatmul.f32.gmra.mxu0 %v1687
        %v1731 = vpop.f32.mrf.mxu0
        %v1732 = vadd.f32 0.0, %v1731
        %1733 = vmatmul.f32.gmra.mxu0 %v1689
        %v1734 = vpop.f32.mrf.mxu0
        %v1735 = vadd.f32 0.0, %v1734
        %1736 = vdwg.mxu0
        %v1737 = vadd.f32 %v1663, %v1709
        %v1738 = vadd.f32 %v1664, %v1732
        %v1739 = vadd.f32 %v1665, %v1712
        %v1740 = vadd.f32 %v1666, %v1735
        %1741 = vrot.lane.b32.xlu0 %v1168, 111
        %v1742 = vpop.permute.xlu0 %1741
        %1743 = vrot.lane.b32.xlu0 %v1170, 111
        %v1744 = vpop.permute.xlu0 %1743
        %1745 = vrot.lane.b32.xlu0 %v1169, 111
        %v1746 = vpop.permute.xlu0 %1745
        %1747 = vrot.lane.b32.xlu0 %v1171, 111
        %v1748 = vpop.permute.xlu0 %1747
        %v1749 = vsel %vm1025, %v1742, %v1746
        %v1750 = vsel %vm1025, %v1744, %v1748
        %v1751 = vsel %vm1025, %v1746, %v1742
        %v1752 = vsel %vm1025, %v1748, %v1744
        %v1753 = vmul.f32 %v1749, %v1031
        %v1754 = vmul.f32 %v1751, %v1032
        %v1755 = vmul.f32 %v1750, %v1031
        %v1756 = vmul.f32 %v1752, %v1032
        %v1757 = vld [vmem:[%s6 + $0x8] sm:$0xff]
        %v1758 = vld [vmem:[%s6 + $0x18] sm:$0xff]
        %v1760 = vsel %vm1212, %v1757, 0
        %v1763 = vsel %vm1212, %v1758, 0
        %1765 = vmatpush.msra.mxu0 0.0
        %1766 = vmatpush.msra.mxu0 0.0
        %1767 = vmatpush.msra.mxu0 0.0
        %1768 = vmatpush.msra.mxu0 0.0
        %1769 = vmatpush.msra.mxu0 0.0
        %1770 = vmatpush.msra.mxu0 0.0
        %1771 = vmatpush.msra.mxu0 0.0
        %1772 = vmatpush.msra.mxu0 0.0
        %1773 = vmatpush.msra.mxu0 0.0
        %1774 = vmatpush.msra.mxu0 0.0
        %1775 = vmatpush.msra.mxu0 0.0
        %1776 = vmatpush.msra.mxu0 0.0
        %1777 = vmatpush.msra.mxu0 0.0
        %1778 = vmatpush.msra.mxu0 0.0
        %1779 = vmatpush.msra.mxu0 %v1755
        %1780 = vmatpush.msra.mxu0 %v1753
        %1781 = vmatmul.f32.gmra.mxu0 %v1760
        %v1782 = vpop.f32.mrf.mxu0
        %v1783 = vadd.f32 0.0, %v1782
        %1784 = vmatmul.f32.gmra.mxu0 %v1763
        %v1785 = vpop.f32.mrf.mxu0
        %v1786 = vadd.f32 0.0, %v1785
        %1787 = vdwg.mxu0
        %1788 = vmatpush.msra.mxu0 0.0
        %1789 = vmatpush.msra.mxu0 0.0
        %1790 = vmatpush.msra.mxu0 0.0
        %1791 = vmatpush.msra.mxu0 0.0
        %1792 = vmatpush.msra.mxu0 0.0
        %1793 = vmatpush.msra.mxu0 0.0
        %1794 = vmatpush.msra.mxu0 0.0
        %1795 = vmatpush.msra.mxu0 0.0
        %1796 = vmatpush.msra.mxu0 0.0
        %1797 = vmatpush.msra.mxu0 0.0
        %1798 = vmatpush.msra.mxu0 0.0
        %1799 = vmatpush.msra.mxu0 0.0
        %1800 = vmatpush.msra.mxu0 0.0
        %1801 = vmatpush.msra.mxu0 0.0
        %1802 = vmatpush.msra.mxu0 %v1756
        %1803 = vmatpush.msra.mxu0 %v1754
        %1804 = vmatmul.f32.gmra.mxu0 %v1760
        %v1805 = vpop.f32.mrf.mxu0
        %v1806 = vadd.f32 0.0, %v1805
        %1807 = vmatmul.f32.gmra.mxu0 %v1763
        %v1808 = vpop.f32.mrf.mxu0
        %v1809 = vadd.f32 0.0, %v1808
        %1810 = vdwg.mxu0
        %v1811 = vadd.f32 %v1737, %v1783
        %v1812 = vadd.f32 %v1738, %v1806
        %v1813 = vadd.f32 %v1739, %v1786
        %v1814 = vadd.f32 %v1740, %v1809
        %v1815 = vld [vmem:[%s7] sm:$0xff]
        %v1816 = vld [vmem:[%s7 + $0x8] sm:$0xff]
        %1818 = vset.pattern.permute.xlu0 0
        %1819 = vperm.xlu0 %1818, %v1815
        %v1820 = vpop.permute.xlu0 %1819
        %1823 = vset.pattern.permute.xlu0 0
        %1824 = vperm.xlu0 %1823, %v1816
        %v1825 = vpop.permute.xlu0 %1824
        %v1827 = vadd.f32 %v1811, %v1820
        %v1828 = vadd.f32 %v1812, %v1820
        %v1829 = vadd.f32 %v1813, %v1825
        %v1830 = vadd.f32 %v1814, %v1825
        %v1831 = vmax.f32 %v1827, 0.0
        %v1832 = vmax.f32 %v1828, 0.0
        %v1833 = vmax.f32 %v1829, 0.0
        %v1834 = vmax.f32 %v1830, 0.0
        %v1835 = vld [vmem:[%s8] sm:$0xff]
        %v1836 = vld [vmem:[%s8 + $0x8] sm:$0xff]
        %v1837 = vld [vmem:[%s8 + $0x10] sm:$0xff]
        %v1838 = vld [vmem:[%s8 + $0x18] sm:$0x1f]
        %v1839 = vld [vmem:[%s9] sm:$0xff]
        %v1840 = vld [vmem:[%s9 + $0x8] sm:$0xff]
        %v1841 = vld [vmem:[%s9 + $0x10] sm:$0xff]
        %v1842 = vld [vmem:[%s9 + $0x18] sm:$0x1f]
        %1844 = vset.pattern.permute.xlu0 0
        %1845 = vperm.xlu0 %1844, %v1839
        %v1846 = vpop.permute.xlu0 %1845
        %1849 = vset.pattern.permute.xlu0 0
        %1850 = vperm.xlu0 %1849, %v1840
        %v1851 = vpop.permute.xlu0 %1850
        %1854 = vset.pattern.permute.xlu0 0
        %1855 = vperm.xlu0 %1854, %v1841
        %v1856 = vpop.permute.xlu0 %1855
        %1859 = vset.pattern.permute.xlu0 0
        %1860 = vperm.xlu0 %1859, %v1842
        %v1861 = vpop.permute.xlu0 %1860
        %v1864 = vsel %vm1212, %v1835, 0
        %v1867 = vsel %vm1212, %v1836, 0
        %v1870 = vsel %vm1212, %v1837, 0
        %v1873 = vsel %vm1212, %v1838, 0
        %1875 = vmatpush.msra.mxu0 0.0
        %1876 = vmatpush.msra.mxu0 0.0
        %1877 = vmatpush.msra.mxu0 0.0
        %1878 = vmatpush.msra.mxu0 0.0
        %1879 = vmatpush.msra.mxu0 0.0
        %1880 = vmatpush.msra.mxu0 0.0
        %1881 = vmatpush.msra.mxu0 0.0
        %1882 = vmatpush.msra.mxu0 0.0
        %1883 = vmatpush.msra.mxu0 0.0
        %1884 = vmatpush.msra.mxu0 0.0
        %1885 = vmatpush.msra.mxu0 0.0
        %1886 = vmatpush.msra.mxu0 0.0
        %1887 = vmatpush.msra.mxu0 0.0
        %1888 = vmatpush.msra.mxu0 0.0
        %1889 = vmatpush.msra.mxu0 %v1833
        %1890 = vmatpush.msra.mxu0 %v1831
        %1891 = vmatmul.f32.gmra.mxu0 %v1864
        %v1892 = vpop.f32.mrf.mxu0
        %v1893 = vadd.f32 %v1846, %v1892
        %1894 = vmatmul.f32.gmra.mxu0 %v1867
        %v1895 = vpop.f32.mrf.mxu0
        %v1896 = vadd.f32 %v1851, %v1895
        %1897 = vmatmul.f32.gmra.mxu0 %v1870
        %v1898 = vpop.f32.mrf.mxu0
        %v1899 = vadd.f32 %v1856, %v1898
        %1900 = vmatmul.f32.gmra.mxu0 %v1873
        %v1901 = vpop.f32.mrf.mxu0
        %v1902 = vadd.f32 %v1861, %v1901
        %1903 = vdwg.mxu0
        %1904 = vmatpush.msra.mxu0 0.0
        %1905 = vmatpush.msra.mxu0 0.0
        %1906 = vmatpush.msra.mxu0 0.0
        %1907 = vmatpush.msra.mxu0 0.0
        %1908 = vmatpush.msra.mxu0 0.0
        %1909 = vmatpush.msra.mxu0 0.0
        %1910 = vmatpush.msra.mxu0 0.0
        %1911 = vmatpush.msra.mxu0 0.0
        %1912 = vmatpush.msra.mxu0 0.0
        %1913 = vmatpush.msra.mxu0 0.0
        %1914 = vmatpush.msra.mxu0 0.0
        %1915 = vmatpush.msra.mxu0 0.0
        %1916 = vmatpush.msra.mxu0 0.0
        %1917 = vmatpush.msra.mxu0 0.0
        %1918 = vmatpush.msra.mxu0 %v1834
        %1919 = vmatpush.msra.mxu0 %v1832
        %1920 = vmatmul.f32.gmra.mxu0 %v1864
        %v1921 = vpop.f32.mrf.mxu0
        %v1922 = vadd.f32 %v1846, %v1921
        %1923 = vmatmul.f32.gmra.mxu0 %v1867
        %v1924 = vpop.f32.mrf.mxu0
        %v1925 = vadd.f32 %v1851, %v1924
        %1926 = vmatmul.f32.gmra.mxu0 %v1870
        %v1927 = vpop.f32.mrf.mxu0
        %v1928 = vadd.f32 %v1856, %v1927
        %1929 = vmatmul.f32.gmra.mxu0 %v1873
        %v1930 = vpop.f32.mrf.mxu0
        %v1931 = vadd.f32 %v1861, %v1930
        %1932 = vdwg.mxu0
        %v1933 = vmax.f32 %v1893, 0.0
        %v1934 = vmax.f32 %v1922, 0.0
        %v1935 = vmax.f32 %v1896, 0.0
        %v1936 = vmax.f32 %v1925, 0.0
        %v1937 = vmax.f32 %v1899, 0.0
        %v1938 = vmax.f32 %v1928, 0.0
        %v1939 = vmax.f32 %v1902, 0.0
        %v1940 = vmax.f32 %v1931, 0.0
        %v1941 = vld [vmem:[%s11] sm:$0xff]
        %v1942 = vld [vmem:[%s11 + $0x8] sm:$0xff]
        %v1943 = vld [vmem:[%s11 + $0x10] sm:$0xff]
        %v1944 = vld [vmem:[%s11 + $0x18] sm:$0xff]
        %v1945 = vld [vmem:[%s10] sm:$0xff]
        %v1946 = vld [vmem:[%s10 + $0x8] sm:$0xff]
        %v1947 = vld [vmem:[%s10 + $0x10] sm:$0xff]
        %v1948 = vld [vmem:[%s10 + $0x18] sm:$0xff]
        %1950 = vset.pattern.permute.xlu0 0
        %1951 = vperm.xlu0 %1950, %v1945
        %v1952 = vpop.permute.xlu0 %1951
        %1955 = vset.pattern.permute.xlu0 0
        %1956 = vperm.xlu0 %1955, %v1946
        %v1957 = vpop.permute.xlu0 %1956
        %1960 = vset.pattern.permute.xlu0 0
        %1961 = vperm.xlu0 %1960, %v1947
        %v1962 = vpop.permute.xlu0 %1961
        %1965 = vset.pattern.permute.xlu0 0
        %1966 = vperm.xlu0 %1965, %v1948
        %v1967 = vpop.permute.xlu0 %1966
        %v1969 = vperm.slane %v439, 0
        %v1970 = vperm.slane %v439, 4
        %v1973 = vperm.slane %v1969, 0
        %v1974 = vperm.slane %v1970, 0
        %v1975 = vmul.f32 %v1952, %v1973
        %v1976 = vmul.f32 %v1952, %v1974
        %v1977 = vmul.f32 %v1957, %v1973
        %v1978 = vmul.f32 %v1957, %v1974
        %v1979 = vmul.f32 %v1962, %v1973
        %v1980 = vmul.f32 %v1962, %v1974
        %v1981 = vmul.f32 %v1967, %v1973
        %v1982 = vmul.f32 %v1967, %v1974
        %vm1983 = vcmask 236544
        %v1985 = vsel %vm1983, %v1941, 0
        %v1988 = vsel %vm1983, %v1942, 0
        %v1991 = vsel %vm1983, %v1943, 0
        %v1994 = vsel %vm1983, %v1944, 0
        %vm1996 = vcmask 1044480
        %v1998 = vsel %vm1996, %v1939, 0
        %v2001 = vsel %vm1996, %v1940, 0
        %2003 = vmatpush.msra.mxu0 0.0
        %2004 = vmatpush.msra.mxu0 0.0
        %2005 = vmatpush.msra.mxu0 0.0
        %2006 = vmatpush.msra.mxu0 0.0
        %2007 = vmatpush.msra.mxu0 0.0
        %2008 = vmatpush.msra.mxu0 0.0
        %2009 = vmatpush.msra.mxu0 0.0
        %2010 = vmatpush.msra.mxu0 0.0
        %2011 = vmatpush.msra.mxu0 0.0
        %2012 = vmatpush.msra.mxu0 0.0
        %2013 = vmatpush.msra.mxu0 0.0
        %2014 = vmatpush.msra.mxu0 0.0
        %2015 = vmatpush.msra.mxu0 %v1998
        %2016 = vmatpush.msra.mxu0 %v1937
        %2017 = vmatpush.msra.mxu0 %v1935
        %2018 = vmatpush.msra.mxu0 %v1933
        %2019 = vmatmul.f32.gmra.mxu0 %v1985
        %v2020 = vpop.f32.mrf.mxu0
        %v2021 = vadd.f32 %v1975, %v2020
        %2022 = vmatmul.f32.gmra.mxu0 %v1988
        %v2023 = vpop.f32.mrf.mxu0
        %v2024 = vadd.f32 %v1977, %v2023
        %2025 = vmatmul.f32.gmra.mxu0 %v1991
        %v2026 = vpop.f32.mrf.mxu0
        %v2027 = vadd.f32 %v1979, %v2026
        %2028 = vmatmul.f32.gmra.mxu0 %v1994
        %v2029 = vpop.f32.mrf.mxu0
        %v2030 = vadd.f32 %v1981, %v2029
        %2031 = vdwg.mxu0
        %2032 = vmatpush.msra.mxu0 0.0
        %2033 = vmatpush.msra.mxu0 0.0
        %2034 = vmatpush.msra.mxu0 0.0
        %2035 = vmatpush.msra.mxu0 0.0
        %2036 = vmatpush.msra.mxu0 0.0
        %2037 = vmatpush.msra.mxu0 0.0
        %2038 = vmatpush.msra.mxu0 0.0
        %2039 = vmatpush.msra.mxu0 0.0
        %2040 = vmatpush.msra.mxu0 0.0
        %2041 = vmatpush.msra.mxu0 0.0
        %2042 = vmatpush.msra.mxu0 0.0
        %2043 = vmatpush.msra.mxu0 0.0
        %2044 = vmatpush.msra.mxu0 %v2001
        %2045 = vmatpush.msra.mxu0 %v1938
        %2046 = vmatpush.msra.mxu0 %v1936
        %2047 = vmatpush.msra.mxu0 %v1934
        %2048 = vmatmul.f32.gmra.mxu0 %v1985
        %v2049 = vpop.f32.mrf.mxu0
        %v2050 = vadd.f32 %v1976, %v2049
        %2051 = vmatmul.f32.gmra.mxu0 %v1988
        %v2052 = vpop.f32.mrf.mxu0
        %v2053 = vadd.f32 %v1978, %v2052
        %2054 = vmatmul.f32.gmra.mxu0 %v1991
        %v2055 = vpop.f32.mrf.mxu0
        %v2056 = vadd.f32 %v1980, %v2055
        %2057 = vmatmul.f32.gmra.mxu0 %v1994
        %v2058 = vpop.f32.mrf.mxu0
        %v2059 = vadd.f32 %v1982, %v2058
        %2060 = vdwg.mxu0
        %2061 = vset.pattern.permute.xlu0 1
        %2062 = vperm.xlu0 %2061, %v1945
        %v2063 = vpop.permute.xlu0 %2062
        %2065 = vset.pattern.permute.xlu0 1
        %2066 = vperm.xlu0 %2065, %v1946
        %v2067 = vpop.permute.xlu0 %2066
        %2069 = vset.pattern.permute.xlu0 1
        %2070 = vperm.xlu0 %2069, %v1947
        %v2071 = vpop.permute.xlu0 %2070
        %2073 = vset.pattern.permute.xlu0 1
        %2074 = vperm.xlu0 %2073, %v1948
        %v2075 = vpop.permute.xlu0 %2074
        %v2077 = vperm.slane %v439, 1
        %v2078 = vperm.slane %v439, 5
        %v2081 = vperm.slane %v2077, 1
        %v2082 = vperm.slane %v2078, 1
        %v2083 = vmul.f32 %v2063, %v2081
        %v2084 = vmul.f32 %v2063, %v2082
        %v2085 = vmul.f32 %v2067, %v2081
        %v2086 = vmul.f32 %v2067, %v2082
        %v2087 = vmul.f32 %v2071, %v2081
        %v2088 = vmul.f32 %v2071, %v2082
        %v2089 = vmul.f32 %v2075, %v2081
        %v2090 = vmul.f32 %v2075, %v2082
        %v2091 = vadd.f32 %v2021, %v2083
        %v2092 = vadd.f32 %v2050, %v2084
        %v2093 = vadd.f32 %v2024, %v2085
        %v2094 = vadd.f32 %v2053, %v2086
        %v2095 = vadd.f32 %v2027, %v2087
        %v2096 = vadd.f32 %v2056, %v2088
        %v2097 = vadd.f32 %v2030, %v2089
        %v2098 = vadd.f32 %v2059, %v2090
        %2099 = vset.pattern.permute.xlu0 2
        %2100 = vperm.xlu0 %2099, %v1945
        %v2101 = vpop.permute.xlu0 %2100
        %2103 = vset.pattern.permute.xlu0 2
        %2104 = vperm.xlu0 %2103, %v1946
        %v2105 = vpop.permute.xlu0 %2104
        %2107 = vset.pattern.permute.xlu0 2
        %2108 = vperm.xlu0 %2107, %v1947
        %v2109 = vpop.permute.xlu0 %2108
        %2111 = vset.pattern.permute.xlu0 2
        %2112 = vperm.xlu0 %2111, %v1948
        %v2113 = vpop.permute.xlu0 %2112
        %v2115 = vperm.slane %v439, 2
        %v2116 = vperm.slane %v439, 6
        %v2119 = vperm.slane %v2115, 2
        %v2120 = vperm.slane %v2116, 2
        %v2121 = vmul.f32 %v2101, %v2119
        %v2122 = vmul.f32 %v2101, %v2120
        %v2123 = vmul.f32 %v2105, %v2119
        %v2124 = vmul.f32 %v2105, %v2120
        %v2125 = vmul.f32 %v2109, %v2119
        %v2126 = vmul.f32 %v2109, %v2120
        %v2127 = vmul.f32 %v2113, %v2119
        %v2128 = vmul.f32 %v2113, %v2120
        %v2129 = vadd.f32 %v2091, %v2121
        %v2130 = vadd.f32 %v2092, %v2122
        %v2131 = vadd.f32 %v2093, %v2123
        %v2132 = vadd.f32 %v2094, %v2124
        %v2133 = vadd.f32 %v2095, %v2125
        %v2134 = vadd.f32 %v2096, %v2126
        %v2135 = vadd.f32 %v2097, %v2127
        %v2136 = vadd.f32 %v2098, %v2128
        %v2137 = vld [vmem:[%s12] sm:$0xff]
        %v2138 = vld [vmem:[%s12 + $0x8] sm:$0xff]
        %v2139 = vld [vmem:[%s12 + $0x10] sm:$0xff]
        %v2140 = vld [vmem:[%s12 + $0x18] sm:$0xff]
        %2142 = vset.pattern.permute.xlu0 0
        %2143 = vperm.xlu0 %2142, %v2137
        %v2144 = vpop.permute.xlu0 %2143
        %2147 = vset.pattern.permute.xlu0 0
        %2148 = vperm.xlu0 %2147, %v2138
        %v2149 = vpop.permute.xlu0 %2148
        %2152 = vset.pattern.permute.xlu0 0
        %2153 = vperm.xlu0 %2152, %v2139
        %v2154 = vpop.permute.xlu0 %2153
        %2157 = vset.pattern.permute.xlu0 0
        %2158 = vperm.xlu0 %2157, %v2140
        %v2159 = vpop.permute.xlu0 %2158
        %v2161 = vadd.f32 %v2129, %v2144
        %v2162 = vadd.f32 %v2130, %v2144
        %v2163 = vadd.f32 %v2131, %v2149
        %v2164 = vadd.f32 %v2132, %v2149
        %v2165 = vadd.f32 %v2133, %v2154
        %v2166 = vadd.f32 %v2134, %v2154
        %v2167 = vadd.f32 %v2135, %v2159
        %v2168 = vadd.f32 %v2136, %v2159
        %2169 = vst [vmem:[%s433] sm:$0xff] %v2161
        %2170 = vst [vmem:[%s433 + $0x8] sm:$0xff] %v2162
        %2171 = vst [vmem:[%s433 + $0x10] sm:$0xff] %v2163
        %2172 = vst [vmem:[%s433 + $0x18] sm:$0xff] %v2164
        %2173 = vst [vmem:[%s433 + $0x20] sm:$0xff] %v2165
        %2174 = vst [vmem:[%s433 + $0x28] sm:$0xff] %v2166
        %2175 = vst [vmem:[%s433 + $0x30] sm:$0xff] %v2167
        %2176 = vst [vmem:[%s433 + $0x38] sm:$0xff] %v2168
        %s2177 = sand.u32 %s313, 1
        %s2178 = scalar_lea.sflag [#allocation3], %s2177
        %s2179 = sand.u32 %s313, 1
        %s2180 = smul.addr %s2179, 64
        %s2181 = scalar_lea.vmem [#allocation2], %s2180
        // Predicated region
        $region73: #{tpu_custom_call.1} parent=71 // pred_check
          %p2182 = pneg %p323
        $region74: #{tpu_custom_call.1} parent=71 // pred_check_branch
          %2184 = sbr.rel (%p2182) target = $region76
        $region75: #{tpu_custom_call.1} parent=71 // pred_region
          %2186 = vsyncadd %s2178, 0
          %s2187 = smul.addr %s27, 8
          %s2188 = smul.addr %s2187, 8
          %s2189 = scalar_lea.hbm %s13, %s2188
          %s2190 = sshll.u32 %s2181, 4
          %s2191 = int_to_ptr.vmem [resolvable:$true] %s2190
          %s2192 = sshll.u32 %s2189, 4
          %s2193 = int_to_ptr.hbm [resolvable:$true] %s2192
          %2198 = dma.vmem_to_hbm [thread:$0]  %s2191, 1024, %s2193, %s2178, 256, 256, 16
        $region76: #{tpu_custom_call.1} parent=71 // pred_fallthru
          _
      $region72: #{tpu_custom_call.1} parent=5 // pred_fallthru
        _
      %p2199 = scmp.le.s32.totalorder 2, %s22
      // Predicated region
      $region77: #{tpu_custom_call.1} parent=5 // pred_check
        %p2200 = pneg %p2199
      $region78: #{tpu_custom_call.1} parent=5 // pred_check_branch
        %2202 = sbr.rel (%p2200) target = $region80
      $region79: #{tpu_custom_call.1} parent=5 // pred_region
        %s2203 = ssub.s32 %s22, 2
        // Predicated region
        $region81: #{tpu_custom_call.1} parent=79 // pred_check
          %p2204 = pneg %p329
        $region82: #{tpu_custom_call.1} parent=79 // pred_check_branch
          %2206 = sbr.rel (%p2204) target = $region84
        $region83: #{tpu_custom_call.1} parent=79 // pred_region
          %s2207 = sand.u32 %s314, 1
          %s2208 = scalar_lea.sflag [#allocation3], %s2207
          %s2209 = sand.u32 %s314, 1
          %s2210 = smul.addr %s2209, 64
          %s2211 = scalar_lea.vmem [#allocation2], %s2210
          %2213 = dma.done %s2208, 1024
        $region84: #{tpu_custom_call.1} parent=79 // pred_fallthru
          _
      $region80: #{tpu_custom_call.1} parent=5 // pred_fallthru
        _
    $region6: #{tpu_custom_call.1} parent=1 // loop_footer
      %s26 = sadd.s32 1, %s22
    $region7: #{tpu_custom_call.1} parent=1 // loop_footer_branch
      %21 = sbr.rel target = $region3
    $region8: #{tpu_custom_call.1} parent=1 // loop_exit
      _
    %2214 = vsyncpa [#allocation3], 1
    %s2215 = scalar_lea.sflag [#allocation3], 1
    %2216 = vsyncpa %s2215, 1

</llo_original>
